<compile_context>
chip_gen: v7x
topology: tpu7x:2x2x1
jax: 0.10.0
libtpu: 0.0.40
codegen_flags: <defaults>
</compile_context>

<pallas_src>
import math

import jax
import jax.numpy as jnp
from jax.experimental import pallas as pl
from jax.experimental.pallas import tpu as pltpu

FEATURE_DIM = 64
NUM_LAYERS = 2


def _gnn2_kernel(x_ref, w1_ref, b1_ref, w2_ref, b2_ref, w3_ref, b3_ref, out_ref):
    """Fused num_layers x AttentionalPropagation2 (+ residual) for a batch block.

    x_ref/out_ref: [batch_block, D, N]   (channels on sublanes, positions on lanes)
    wK_ref:        [L, C_out, C_in]      stacked per-layer 1x1-conv weights
    bK_ref:        [L, C_out, 1]         stacked per-layer biases
    """
    f32 = jnp.float32
    n_layers = w1_ref.shape[0]
    batch_block = x_ref.shape[0]

    for bi in range(batch_block):               # static, small batch block
        x = x_ref[bi]                           # [D, N]
        # Layers are serially dependent (residual chain), so unrolling them does
        # not grow live ranges: layer l's intermediates die before layer l+1.
        for l in range(n_layers):
            # --- MLP([D, 2D, 2D, D]) of 1x1 convs: y = W @ x + b --------------
            h = jnp.maximum(
                jnp.dot(w1_ref[l], x, preferred_element_type=f32) + b1_ref[l], 0.0)
            h = jnp.maximum(
                jnp.dot(w2_ref[l], h, preferred_element_type=f32) + b2_ref[l], 0.0)
            f = jnp.dot(w3_ref[l], h, preferred_element_type=f32) + b3_ref[l]  # [D, N]

            # --- A = f^T f (Gram over positions); softmax over dim=-2 ---------
            # TODO(synk): for very large N (>~1500 keypoints) tile the N x N
            # score matrix flash-style instead of materializing it whole.
            a = jnp.dot(f.T, f, preferred_element_type=f32)            # [N, N]
            a = a - jnp.max(a, axis=0, keepdims=True)                  # column-wise
            e = jnp.exp(a)
            p = e * pl.reciprocal(jnp.sum(e, axis=0, keepdims=True), approx=True)

            # --- delta = f @ A ; residual -------------------------------------
            x = x + jnp.dot(f, p, preferred_element_type=f32)          # [D, N]

        out_ref[bi] = x


def attentional_gnn2(desc, params, *, batch_block=1):
    """desc: [B, D, N] float32 (PyTorch Conv1d layout). Returns same layout."""
    B, D, N = desc.shape
    assert B % batch_block == 0
    grid = (B // batch_block,)

    x_spec = pl.BlockSpec((batch_block, D, N), lambda b: (b, 0, 0))
    w_specs = [pl.BlockSpec(p.shape, lambda b: (0, 0, 0)) for p in params]

    grid_spec = pltpu.PrefetchScalarGridSpec(
        num_scalar_prefetch=0,
        grid=grid,
        in_specs=[x_spec] + w_specs,
        out_specs=x_spec,
    )
    return pl.pallas_call(
        _gnn2_kernel,
        out_shape=jax.ShapeDtypeStruct((B, D, N), jnp.float32),
        grid_spec=grid_spec,
        compiler_params=pltpu.CompilerParams(
            dimension_semantics=("parallel",),        # shard batch over TensorCores
            vmem_limit_bytes=32 * 1024 * 1024,
        ),
    )(desc, *params)


def init_params(key, num_layers=NUM_LAYERS, feature_dim=FEATURE_DIM):
    """Stacked per-layer params matching MLP([D, 2D, 2D, D]) with PyTorch init."""
    d = feature_dim

    def conv1x1(k, cin, cout):
        bound = 1.0 / math.sqrt(cin)      # PyTorch Conv1d default: U(+-1/sqrt(fan_in))
        kw, kb = jax.random.split(k)
        w = jax.random.uniform(kw, (cout, cin), jnp.float32, -bound, bound)
        b = jax.random.uniform(kb, (cout,), jnp.float32, -bound, bound)
        return w, b

    cols = [[] for _ in range(6)]
    for k in jax.random.split(key, num_layers):
        k1, k2, k3 = jax.random.split(k, 3)
        w1, b1 = conv1x1(k1, d, 2 * d)
        w2, b2 = conv1x1(k2, 2 * d, 2 * d)
        w3, b3 = conv1x1(k3, 2 * d, d)
        b3 = jnp.zeros_like(b3)           # nn.init.constant_(self.mlp[-1].bias, 0.0)
        for col, arr in zip(cols, (w1, b1[:, None], w2, b2[:, None], w3, b3[:, None])):
            col.append(arr)
    return tuple(jnp.stack(c) for c in cols)


def _reference(desc, params):
    """Pure-JAX re-implementation of AttentionalGNN2.forward for validation."""
    w1s, b1s, w2s, b2s, w3s, b3s = params
    hi = jax.lax.Precision.HIGHEST
    for l in range(w1s.shape[0]):
        f = desc
        f = jax.nn.relu(jnp.einsum('oc,bcn->bon', w1s[l], f, precision=hi) + b1s[l][None])
        f = jax.nn.relu(jnp.einsum('oc,bcn->bon', w2s[l], f, precision=hi) + b2s[l][None])
        f = jnp.einsum('oc,bcn->bon', w3s[l], f, precision=hi) + b3s[l][None]
        a = jnp.einsum('bci,bcj->bij', f, f, precision=hi)     # features^T @ features
        a = jax.nn.softmax(a, axis=-2)
        desc = desc + jnp.einsum('bcn,bnm->bcm', f, a, precision=hi)
    return desc


if __name__ == "__main__":
    B, N = 2, 16
    key = jax.random.PRNGKey(0)
    k_in, k_params = jax.random.split(key)

    desc = jax.random.normal(k_in, (B, FEATURE_DIM, N), jnp.float32)   # [B, D, N]
    params = init_params(k_params)

    out = attentional_gnn2(desc, params)
    out = jax.block_until_ready(out)

    assert out.shape == (B, FEATURE_DIM, N) and out.dtype == jnp.float32
    ref = _reference(desc, params)
    max_err = float(jnp.max(jnp.abs(out - ref)))
    assert max_err < 5e-2, f"kernel mismatch vs reference: max abs err {max_err}"
    print("KERNEL_OK")
</pallas_src>

<mosaic_0001>
module attributes {stable_mosaic.version = 11 : i64} {
  func.func @_gnn2_kernel(%arg0: i32, %arg1: memref<1x64x16xf32, #tpu.memory_space<vmem>>, %arg2: memref<2x128x64xf32, #tpu.memory_space<vmem>>, %arg3: memref<2x128x1xf32, #tpu.memory_space<vmem>>, %arg4: memref<2x128x128xf32, #tpu.memory_space<vmem>>, %arg5: memref<2x128x1xf32, #tpu.memory_space<vmem>>, %arg6: memref<2x64x128xf32, #tpu.memory_space<vmem>>, %arg7: memref<2x64x1xf32, #tpu.memory_space<vmem>>, %arg8: memref<1x64x16xf32, #tpu.memory_space<vmem>>) attributes {dimension_semantics = [#tpu.dimension_semantics<parallel>], iteration_bounds = array<i64: 2>, scalar_prefetch = 0 : i64, scratch_operands = 0 : i64, tpu.core_type = #tpu.core_type<tc>, window_params = [{transform_indices = @transform_0, window_bounds = array<i64: 1, 64, 16>}, {pipeline_mode = #tpu.pipeline_mode<synchronous>, transform_indices = @transform_1, window_bounds = array<i64: 2, 128, 64>}, {pipeline_mode = #tpu.pipeline_mode<synchronous>, transform_indices = @transform_2, window_bounds = array<i64: 2, 128, 1>}, {pipeline_mode = #tpu.pipeline_mode<synchronous>, transform_indices = @transform_3, window_bounds = array<i64: 2, 128, 128>}, {pipeline_mode = #tpu.pipeline_mode<synchronous>, transform_indices = @transform_4, window_bounds = array<i64: 2, 128, 1>}, {pipeline_mode = #tpu.pipeline_mode<synchronous>, transform_indices = @transform_5, window_bounds = array<i64: 2, 64, 128>}, {pipeline_mode = #tpu.pipeline_mode<synchronous>, transform_indices = @transform_6, window_bounds = array<i64: 2, 64, 1>}, {transform_indices = @transform_7, window_bounds = array<i64: 1, 64, 16>}]} {
    %c0 = arith.constant 0 : index
    %c0_0 = arith.constant 0 : index
    %c0_1 = arith.constant 0 : index
    %0 = vector.load %arg1[%c0, %c0_0, %c0_1] : memref<1x64x16xf32, #tpu.memory_space<vmem>>, vector<1x64x16xf32>
    %1 = vector.shape_cast %0 : vector<1x64x16xf32> to vector<64x16xf32>
    %c0_2 = arith.constant 0 : index
    %c0_3 = arith.constant 0 : index
    %c0_4 = arith.constant 0 : index
    %2 = vector.load %arg2[%c0_2, %c0_3, %c0_4] : memref<2x128x64xf32, #tpu.memory_space<vmem>>, vector<1x128x64xf32>
    %3 = vector.shape_cast %2 : vector<1x128x64xf32> to vector<128x64xf32>
    %cst = arith.constant dense<0.000000e+00> : vector<128x16xf32>
    %4 = tpu.matmul %3, %1, %cst {dimension_numbers = #tpu.dot_dimension_numbers<[1], [0], [0], [1], [0, 0, 1, 1], [], []>} : vector<128x64xf32>, vector<64x16xf32>, vector<128x16xf32> -> vector<128x16xf32>
    %c0_5 = arith.constant 0 : index
    %c0_6 = arith.constant 0 : index
    %c0_7 = arith.constant 0 : index
    %5 = vector.load %arg3[%c0_5, %c0_6, %c0_7] : memref<2x128x1xf32, #tpu.memory_space<vmem>>, vector<1x128x1xf32>
    %6 = vector.shape_cast %5 : vector<1x128x1xf32> to vector<128x1xf32>
    %7 = vector.broadcast %6 : vector<128x1xf32> to vector<128x16xf32>
    %8 = arith.addf %4, %7 : vector<128x16xf32>
    %cst_8 = arith.constant 0.000000e+00 : f32
    %9 = vector.broadcast %cst_8 : f32 to vector<128x16xf32>
    %10 = arith.maximumf %8, %9 : vector<128x16xf32>
    %c0_9 = arith.constant 0 : index
    %c0_10 = arith.constant 0 : index
    %c0_11 = arith.constant 0 : index
    %11 = vector.load %arg4[%c0_9, %c0_10, %c0_11] : memref<2x128x128xf32, #tpu.memory_space<vmem>>, vector<1x128x128xf32>
    %12 = vector.shape_cast %11 : vector<1x128x128xf32> to vector<128x128xf32>
    %cst_12 = arith.constant dense<0.000000e+00> : vector<128x16xf32>
    %13 = tpu.matmul %12, %10, %cst_12 {dimension_numbers = #tpu.dot_dimension_numbers<[1], [0], [0], [1], [0, 0, 1, 1], [], []>} : vector<128x128xf32>, vector<128x16xf32>, vector<128x16xf32> -> vector<128x16xf32>
    %c0_13 = arith.constant 0 : index
    %c0_14 = arith.constant 0 : index
    %c0_15 = arith.constant 0 : index
    %14 = vector.load %arg5[%c0_13, %c0_14, %c0_15] : memref<2x128x1xf32, #tpu.memory_space<vmem>>, vector<1x128x1xf32>
    %15 = vector.shape_cast %14 : vector<1x128x1xf32> to vector<128x1xf32>
    %16 = vector.broadcast %15 : vector<128x1xf32> to vector<128x16xf32>
    %17 = arith.addf %13, %16 : vector<128x16xf32>
    %cst_16 = arith.constant 0.000000e+00 : f32
    %18 = vector.broadcast %cst_16 : f32 to vector<128x16xf32>
    %19 = arith.maximumf %17, %18 : vector<128x16xf32>
    %c0_17 = arith.constant 0 : index
    %c0_18 = arith.constant 0 : index
    %c0_19 = arith.constant 0 : index
    %20 = vector.load %arg6[%c0_17, %c0_18, %c0_19] : memref<2x64x128xf32, #tpu.memory_space<vmem>>, vector<1x64x128xf32>
    %21 = vector.shape_cast %20 : vector<1x64x128xf32> to vector<64x128xf32>
    %cst_20 = arith.constant dense<0.000000e+00> : vector<64x16xf32>
    %22 = tpu.matmul %21, %19, %cst_20 {dimension_numbers = #tpu.dot_dimension_numbers<[1], [0], [0], [1], [0, 0, 1, 1], [], []>} : vector<64x128xf32>, vector<128x16xf32>, vector<64x16xf32> -> vector<64x16xf32>
    %c0_21 = arith.constant 0 : index
    %c0_22 = arith.constant 0 : index
    %c0_23 = arith.constant 0 : index
    %23 = vector.load %arg7[%c0_21, %c0_22, %c0_23] : memref<2x64x1xf32, #tpu.memory_space<vmem>>, vector<1x64x1xf32>
    %24 = vector.shape_cast %23 : vector<1x64x1xf32> to vector<64x1xf32>
    %25 = vector.broadcast %24 : vector<64x1xf32> to vector<64x16xf32>
    %26 = arith.addf %22, %25 : vector<64x16xf32>
    %27 = tpu.transpose %26, [1, 0] : vector<64x16xf32> -> vector<16x64xf32>
    %cst_24 = arith.constant dense<0.000000e+00> : vector<16x16xf32>
    %28 = tpu.matmul %27, %26, %cst_24 {dimension_numbers = #tpu.dot_dimension_numbers<[1], [0], [0], [1], [0, 0, 1, 1], [], []>} : vector<16x64xf32>, vector<64x16xf32>, vector<16x16xf32> -> vector<16x16xf32>
    %cst_25 = arith.constant dense<0xFF800000> : vector<16xf32>
    %29 = vector.multi_reduction <maximumf>, %28, %cst_25 [0] : vector<16x16xf32> to vector<16xf32>
    %30 = vector.shape_cast %29 : vector<16xf32> to vector<1x16xf32>
    %31 = vector.broadcast %30 : vector<1x16xf32> to vector<16x16xf32>
    %32 = arith.subf %28, %31 : vector<16x16xf32>
    %33 = math.exp %32 : vector<16x16xf32>
    %cst_26 = arith.constant dense<0.000000e+00> : vector<16xf32>
    %34 = vector.multi_reduction <add>, %33, %cst_26 [0] : vector<16x16xf32> to vector<16xf32>
    %35 = vector.shape_cast %34 : vector<16xf32> to vector<1x16xf32>
    %36 = tpu.reciprocal %35 {approx = true} : vector<1x16xf32> -> vector<1x16xf32>
    %37 = vector.broadcast %36 : vector<1x16xf32> to vector<16x16xf32>
    %38 = arith.mulf %33, %37 : vector<16x16xf32>
    %cst_27 = arith.constant dense<0.000000e+00> : vector<64x16xf32>
    %39 = tpu.matmul %26, %38, %cst_27 {dimension_numbers = #tpu.dot_dimension_numbers<[1], [0], [0], [1], [0, 0, 1, 1], [], []>} : vector<64x16xf32>, vector<16x16xf32>, vector<64x16xf32> -> vector<64x16xf32>
    %40 = arith.addf %1, %39 : vector<64x16xf32>
    %c1 = arith.constant 1 : index
    %c0_28 = arith.constant 0 : index
    %c0_29 = arith.constant 0 : index
    %41 = vector.load %arg2[%c1, %c0_28, %c0_29] : memref<2x128x64xf32, #tpu.memory_space<vmem>>, vector<1x128x64xf32>
    %42 = vector.shape_cast %41 : vector<1x128x64xf32> to vector<128x64xf32>
    %cst_30 = arith.constant dense<0.000000e+00> : vector<128x16xf32>
    %43 = tpu.matmul %42, %40, %cst_30 {dimension_numbers = #tpu.dot_dimension_numbers<[1], [0], [0], [1], [0, 0, 1, 1], [], []>} : vector<128x64xf32>, vector<64x16xf32>, vector<128x16xf32> -> vector<128x16xf32>
    %c1_31 = arith.constant 1 : index
    %c0_32 = arith.constant 0 : index
    %c0_33 = arith.constant 0 : index
    %44 = vector.load %arg3[%c1_31, %c0_32, %c0_33] : memref<2x128x1xf32, #tpu.memory_space<vmem>>, vector<1x128x1xf32>
    %45 = vector.shape_cast %44 : vector<1x128x1xf32> to vector<128x1xf32>
    %46 = vector.broadcast %45 : vector<128x1xf32> to vector<128x16xf32>
    %47 = arith.addf %43, %46 : vector<128x16xf32>
    %cst_34 = arith.constant 0.000000e+00 : f32
    %48 = vector.broadcast %cst_34 : f32 to vector<128x16xf32>
    %49 = arith.maximumf %47, %48 : vector<128x16xf32>
    %c1_35 = arith.constant 1 : index
    %c0_36 = arith.constant 0 : index
    %c0_37 = arith.constant 0 : index
    %50 = vector.load %arg4[%c1_35, %c0_36, %c0_37] : memref<2x128x128xf32, #tpu.memory_space<vmem>>, vector<1x128x128xf32>
    %51 = vector.shape_cast %50 : vector<1x128x128xf32> to vector<128x128xf32>
    %cst_38 = arith.constant dense<0.000000e+00> : vector<128x16xf32>
    %52 = tpu.matmul %51, %49, %cst_38 {dimension_numbers = #tpu.dot_dimension_numbers<[1], [0], [0], [1], [0, 0, 1, 1], [], []>} : vector<128x128xf32>, vector<128x16xf32>, vector<128x16xf32> -> vector<128x16xf32>
    %c1_39 = arith.constant 1 : index
    %c0_40 = arith.constant 0 : index
    %c0_41 = arith.constant 0 : index
    %53 = vector.load %arg5[%c1_39, %c0_40, %c0_41] : memref<2x128x1xf32, #tpu.memory_space<vmem>>, vector<1x128x1xf32>
    %54 = vector.shape_cast %53 : vector<1x128x1xf32> to vector<128x1xf32>
    %55 = vector.broadcast %54 : vector<128x1xf32> to vector<128x16xf32>
    %56 = arith.addf %52, %55 : vector<128x16xf32>
    %cst_42 = arith.constant 0.000000e+00 : f32
    %57 = vector.broadcast %cst_42 : f32 to vector<128x16xf32>
    %58 = arith.maximumf %56, %57 : vector<128x16xf32>
    %c1_43 = arith.constant 1 : index
    %c0_44 = arith.constant 0 : index
    %c0_45 = arith.constant 0 : index
    %59 = vector.load %arg6[%c1_43, %c0_44, %c0_45] : memref<2x64x128xf32, #tpu.memory_space<vmem>>, vector<1x64x128xf32>
    %60 = vector.shape_cast %59 : vector<1x64x128xf32> to vector<64x128xf32>
    %cst_46 = arith.constant dense<0.000000e+00> : vector<64x16xf32>
    %61 = tpu.matmul %60, %58, %cst_46 {dimension_numbers = #tpu.dot_dimension_numbers<[1], [0], [0], [1], [0, 0, 1, 1], [], []>} : vector<64x128xf32>, vector<128x16xf32>, vector<64x16xf32> -> vector<64x16xf32>
    %c1_47 = arith.constant 1 : index
    %c0_48 = arith.constant 0 : index
    %c0_49 = arith.constant 0 : index
    %62 = vector.load %arg7[%c1_47, %c0_48, %c0_49] : memref<2x64x1xf32, #tpu.memory_space<vmem>>, vector<1x64x1xf32>
    %63 = vector.shape_cast %62 : vector<1x64x1xf32> to vector<64x1xf32>
    %64 = vector.broadcast %63 : vector<64x1xf32> to vector<64x16xf32>
    %65 = arith.addf %61, %64 : vector<64x16xf32>
    %66 = tpu.transpose %65, [1, 0] : vector<64x16xf32> -> vector<16x64xf32>
    %cst_50 = arith.constant dense<0.000000e+00> : vector<16x16xf32>
    %67 = tpu.matmul %66, %65, %cst_50 {dimension_numbers = #tpu.dot_dimension_numbers<[1], [0], [0], [1], [0, 0, 1, 1], [], []>} : vector<16x64xf32>, vector<64x16xf32>, vector<16x16xf32> -> vector<16x16xf32>
    %cst_51 = arith.constant dense<0xFF800000> : vector<16xf32>
    %68 = vector.multi_reduction <maximumf>, %67, %cst_51 [0] : vector<16x16xf32> to vector<16xf32>
    %69 = vector.shape_cast %68 : vector<16xf32> to vector<1x16xf32>
    %70 = vector.broadcast %69 : vector<1x16xf32> to vector<16x16xf32>
    %71 = arith.subf %67, %70 : vector<16x16xf32>
    %72 = math.exp %71 : vector<16x16xf32>
    %cst_52 = arith.constant dense<0.000000e+00> : vector<16xf32>
    %73 = vector.multi_reduction <add>, %72, %cst_52 [0] : vector<16x16xf32> to vector<16xf32>
    %74 = vector.shape_cast %73 : vector<16xf32> to vector<1x16xf32>
    %75 = tpu.reciprocal %74 {approx = true} : vector<1x16xf32> -> vector<1x16xf32>
    %76 = vector.broadcast %75 : vector<1x16xf32> to vector<16x16xf32>
    %77 = arith.mulf %72, %76 : vector<16x16xf32>
    %cst_53 = arith.constant dense<0.000000e+00> : vector<64x16xf32>
    %78 = tpu.matmul %65, %77, %cst_53 {dimension_numbers = #tpu.dot_dimension_numbers<[1], [0], [0], [1], [0, 0, 1, 1], [], []>} : vector<64x16xf32>, vector<16x16xf32>, vector<64x16xf32> -> vector<64x16xf32>
    %79 = arith.addf %40, %78 : vector<64x16xf32>
    %c0_54 = arith.constant 0 : index
    %c0_55 = arith.constant 0 : index
    %c0_56 = arith.constant 0 : index
    %80 = vector.load %arg8[%c0_54, %c0_55, %c0_56] : memref<1x64x16xf32, #tpu.memory_space<vmem>>, vector<1x64x16xf32>
    %81 = vector.shape_cast %80 : vector<1x64x16xf32> to vector<64x16xf32>
    %82 = vector.shape_cast %79 : vector<64x16xf32> to vector<1x64x16xf32>
    tpu.vector_store %arg8[%c0_54, %c0_55, %c0_56], %82 {strides = array<i32>} : memref<1x64x16xf32, #tpu.memory_space<vmem>>, vector<1x64x16xf32>,
    return
  }
  func.func @transform_0(%arg0: i32) -> (i32, i32, i32) {
    %c0_i32 = arith.constant 0 : i32
    %c0_i32_0 = arith.constant 0 : i32
    %c0_i32_1 = arith.constant 0 : i32
    return %arg0, %c0_i32, %c0_i32_0 : i32, i32, i32
  }
  func.func @transform_1(%arg0: i32) -> (i32, i32, i32) {
    %c0_i32 = arith.constant 0 : i32
    %c0_i32_0 = arith.constant 0 : i32
    %c0_i32_1 = arith.constant 0 : i32
    %c0_i32_2 = arith.constant 0 : i32
    return %c0_i32, %c0_i32_0, %c0_i32_1 : i32, i32, i32
  }
  func.func @transform_2(%arg0: i32) -> (i32, i32, i32) {
    %c0_i32 = arith.constant 0 : i32
    %c0_i32_0 = arith.constant 0 : i32
    %c0_i32_1 = arith.constant 0 : i32
    %c0_i32_2 = arith.constant 0 : i32
    return %c0_i32, %c0_i32_0, %c0_i32_1 : i32, i32, i32
  }
  func.func @transform_3(%arg0: i32) -> (i32, i32, i32) {
    %c0_i32 = arith.constant 0 : i32
    %c0_i32_0 = arith.constant 0 : i32
    %c0_i32_1 = arith.constant 0 : i32
    %c0_i32_2 = arith.constant 0 : i32
    return %c0_i32, %c0_i32_0, %c0_i32_1 : i32, i32, i32
  }
  func.func @transform_4(%arg0: i32) -> (i32, i32, i32) {
    %c0_i32 = arith.constant 0 : i32
    %c0_i32_0 = arith.constant 0 : i32
    %c0_i32_1 = arith.constant 0 : i32
    %c0_i32_2 = arith.constant 0 : i32
    return %c0_i32, %c0_i32_0, %c0_i32_1 : i32, i32, i32
  }
  func.func @transform_5(%arg0: i32) -> (i32, i32, i32) {
    %c0_i32 = arith.constant 0 : i32
    %c0_i32_0 = arith.constant 0 : i32
    %c0_i32_1 = arith.constant 0 : i32
    %c0_i32_2 = arith.constant 0 : i32
    return %c0_i32, %c0_i32_0, %c0_i32_1 : i32, i32, i32
  }
  func.func @transform_6(%arg0: i32) -> (i32, i32, i32) {
    %c0_i32 = arith.constant 0 : i32
    %c0_i32_0 = arith.constant 0 : i32
    %c0_i32_1 = arith.constant 0 : i32
    %c0_i32_2 = arith.constant 0 : i32
    return %c0_i32, %c0_i32_0, %c0_i32_1 : i32, i32, i32
  }
  func.func @transform_7(%arg0: i32) -> (i32, i32, i32) {
    %c0_i32 = arith.constant 0 : i32
    %c0_i32_0 = arith.constant 0 : i32
    %c0_i32_1 = arith.constant 0 : i32
    return %arg0, %c0_i32, %c0_i32_0 : i32, i32, i32
  }
}

</mosaic_0001>

<llo_original>
// kernel: tpu_custom_call.1
$region0: #{tpu_custom_call.1}
  #allocation0 [shape = 'u32[]', space=smem, size = 0x4, offset = 0x4, fixed_abs, tag = 'smem constant byte address 0x4 - core index']
  #allocation1 [shape = 'u32[144,128]{1,0:T(1,128)}', space=vmem, size = 0x12000, scoped, tag = 'internal scratch']
  %s0 = inlined_call_operand.vmem [shape: f32[2,64,16], index: 0, kind: input, shape index: {}]
  %s1 = inlined_call_operand.vmem [shape: f32[2,128,64], index: 1, kind: input, shape index: {}]
  %s2 = inlined_call_operand.vmem [shape: f32[2,128,1], index: 2, kind: input, shape index: {}]
  %s3 = inlined_call_operand.vmem [shape: f32[2,128,128], index: 3, kind: input, shape index: {}]
  %s4 = inlined_call_operand.vmem [shape: f32[2,128,1], index: 4, kind: input, shape index: {}]
  %s5 = inlined_call_operand.vmem [shape: f32[2,64,128], index: 5, kind: input, shape index: {}]
  %s6 = inlined_call_operand.vmem [shape: f32[2,64,1], index: 6, kind: input, shape index: {}]
  %s7 = inlined_call_operand.vmem [shape: f32[2,64,16], index: 7, kind: output, shape index: {}]
  %s8 = sld [smem:[#allocation0]]
  $region61: #{tpu_custom_call.1} parent=0
    _
  %s10 = ssub.s32 1, %s8
  %s11 = scalar_select 0, %s10, %s8
  loop: start=0, step=1, limit=4
  $region2: #{tpu_custom_call.1} parent=0 // loop_pre_header
    _
  $region3: #{tpu_custom_call.1} parent=0 // loop_header
    %s13 = sphi 0, %s17
    %p14 = scmp.ge.s32.totalorder %s13, 4
    %s23 = sphi 0, %s25
    %s26 = sphi 0, %s23
    %s27 = sphi 0, %s26
    %s43 = sphi 0, %s27
    %s47 = sphi 0, %s47
    %s49 = sphi 0, %s47
    %s50 = sphi 0, %s49
    %s64 = sphi 0, %s50
    %s68 = sphi 0, %s68
    %s70 = sphi 0, %s68
    %s71 = sphi 0, %s70
    %s85 = sphi 0, %s71
    %s89 = sphi 0, %s89
    %s91 = sphi 0, %s89
    %s92 = sphi 0, %s91
    %s106 = sphi 0, %s92
    %s110 = sphi 0, %s110
    %s112 = sphi 0, %s110
    %s113 = sphi 0, %s112
    %s127 = sphi 0, %s113
    %s131 = sphi 0, %s131
    %s133 = sphi 0, %s131
    %s134 = sphi 0, %s133
    %s148 = sphi 0, %s134
    %s152 = sphi 0, %s152
    %s154 = sphi 0, %s152
    %s155 = sphi 0, %s154
    %s169 = sphi 0, %s155
    %s175 = sphi 0, %s177
    %s178 = sphi 0, %s175
    %s179 = sphi 0, %s178
    %s195 = sphi 0, %s179
  $region4: #{tpu_custom_call.1} parent=0 // loop_header_branch
    %16 = sbr.rel (%p14) target = $region8
  $region5: #{tpu_custom_call.1} parent=0 // loop_body
    %s18 = ssub.s32 %s13, 1
    %s19 = ssub.s32 %s13, 2
    %s20 = sadd.s32 %s13, 1
    %s21 = ssub.s32 %s13, %s20
    %p22 = scmp.eq.s32.totalorder %s21, 0
    %s24 = sadd.s32 %s23, 1
    %s25 = scalar_select %p22, %s23, %s24
    %p28 = pneg %p22
    %p29 = scmp.eq.s32.totalorder %s13, 1
    %p30 = por %p28, %p29
    %p31 = scmp.ne.s32.totalorder %s23, %s26
    %p32 = scmp.eq.s32.totalorder %s13, 0
    %p33 = por %p31, %p32
    %p34 = scmp.ne.s32.totalorder %s23, %s26
    %p35 = scmp.eq.s32.totalorder %s18, 1
    %p36 = por %p34, %p35
    %p37 = scmp.ne.s32.totalorder %s26, %s27
    %p38 = scmp.eq.s32.totalorder %s18, 0
    %p39 = por %p37, %p38
    %p40 = scmp.ne.s32.totalorder %s26, %s27
    %p41 = scmp.eq.s32.totalorder %s19, 1
    %p42 = por %p40, %p41
    %p44 = scmp.ne.s32.totalorder %s27, %s43
    %p45 = scmp.eq.s32.totalorder %s19, 0
    %p46 = por %p44, %p45
    %s48 = sadd.s32 %s47, 1
    %p51 = scmp.eq.s32.totalorder %s13, 1
    %p52 = scmp.ne.s32.totalorder %s47, %s49
    %p53 = scmp.eq.s32.totalorder %s13, 0
    %p54 = por %p52, %p53
    %p55 = scmp.ne.s32.totalorder %s47, %s49
    %p56 = scmp.eq.s32.totalorder %s18, 1
    %p57 = por %p55, %p56
    %p58 = scmp.ne.s32.totalorder %s49, %s50
    %p59 = scmp.eq.s32.totalorder %s18, 0
    %p60 = por %p58, %p59
    %p61 = scmp.ne.s32.totalorder %s49, %s50
    %p62 = scmp.eq.s32.totalorder %s19, 1
    %p63 = por %p61, %p62
    %p65 = scmp.ne.s32.totalorder %s50, %s64
    %p66 = scmp.eq.s32.totalorder %s19, 0
    %p67 = por %p65, %p66
    %s69 = sadd.s32 %s68, 1
    %p72 = scmp.eq.s32.totalorder %s13, 1
    %p73 = scmp.ne.s32.totalorder %s68, %s70
    %p74 = scmp.eq.s32.totalorder %s13, 0
    %p75 = por %p73, %p74
    %p76 = scmp.ne.s32.totalorder %s68, %s70
    %p77 = scmp.eq.s32.totalorder %s18, 1
    %p78 = por %p76, %p77
    %p79 = scmp.ne.s32.totalorder %s70, %s71
    %p80 = scmp.eq.s32.totalorder %s18, 0
    %p81 = por %p79, %p80
    %p82 = scmp.ne.s32.totalorder %s70, %s71
    %p83 = scmp.eq.s32.totalorder %s19, 1
    %p84 = por %p82, %p83
    %p86 = scmp.ne.s32.totalorder %s71, %s85
    %p87 = scmp.eq.s32.totalorder %s19, 0
    %p88 = por %p86, %p87
    %s90 = sadd.s32 %s89, 1
    %p93 = scmp.eq.s32.totalorder %s13, 1
    %p94 = scmp.ne.s32.totalorder %s89, %s91
    %p95 = scmp.eq.s32.totalorder %s13, 0
    %p96 = por %p94, %p95
    %p97 = scmp.ne.s32.totalorder %s89, %s91
    %p98 = scmp.eq.s32.totalorder %s18, 1
    %p99 = por %p97, %p98
    %p100 = scmp.ne.s32.totalorder %s91, %s92
    %p101 = scmp.eq.s32.totalorder %s18, 0
    %p102 = por %p100, %p101
    %p103 = scmp.ne.s32.totalorder %s91, %s92
    %p104 = scmp.eq.s32.totalorder %s19, 1
    %p105 = por %p103, %p104
    %p107 = scmp.ne.s32.totalorder %s92, %s106
    %p108 = scmp.eq.s32.totalorder %s19, 0
    %p109 = por %p107, %p108
    %s111 = sadd.s32 %s110, 1
    %p114 = scmp.eq.s32.totalorder %s13, 1
    %p115 = scmp.ne.s32.totalorder %s110, %s112
    %p116 = scmp.eq.s32.totalorder %s13, 0
    %p117 = por %p115, %p116
    %p118 = scmp.ne.s32.totalorder %s110, %s112
    %p119 = scmp.eq.s32.totalorder %s18, 1
    %p120 = por %p118, %p119
    %p121 = scmp.ne.s32.totalorder %s112, %s113
    %p122 = scmp.eq.s32.totalorder %s18, 0
    %p123 = por %p121, %p122
    %p124 = scmp.ne.s32.totalorder %s112, %s113
    %p125 = scmp.eq.s32.totalorder %s19, 1
    %p126 = por %p124, %p125
    %p128 = scmp.ne.s32.totalorder %s113, %s127
    %p129 = scmp.eq.s32.totalorder %s19, 0
    %p130 = por %p128, %p129
    %s132 = sadd.s32 %s131, 1
    %p135 = scmp.eq.s32.totalorder %s13, 1
    %p136 = scmp.ne.s32.totalorder %s131, %s133
    %p137 = scmp.eq.s32.totalorder %s13, 0
    %p138 = por %p136, %p137
    %p139 = scmp.ne.s32.totalorder %s131, %s133
    %p140 = scmp.eq.s32.totalorder %s18, 1
    %p141 = por %p139, %p140
    %p142 = scmp.ne.s32.totalorder %s133, %s134
    %p143 = scmp.eq.s32.totalorder %s18, 0
    %p144 = por %p142, %p143
    %p145 = scmp.ne.s32.totalorder %s133, %s134
    %p146 = scmp.eq.s32.totalorder %s19, 1
    %p147 = por %p145, %p146
    %p149 = scmp.ne.s32.totalorder %s134, %s148
    %p150 = scmp.eq.s32.totalorder %s19, 0
    %p151 = por %p149, %p150
    %s153 = sadd.s32 %s152, 1
    %p156 = scmp.eq.s32.totalorder %s13, 1
    %p157 = scmp.ne.s32.totalorder %s152, %s154
    %p158 = scmp.eq.s32.totalorder %s13, 0
    %p159 = por %p157, %p158
    %p160 = scmp.ne.s32.totalorder %s152, %s154
    %p161 = scmp.eq.s32.totalorder %s18, 1
    %p162 = por %p160, %p161
    %p163 = scmp.ne.s32.totalorder %s154, %s155
    %p164 = scmp.eq.s32.totalorder %s18, 0
    %p165 = por %p163, %p164
    %p166 = scmp.ne.s32.totalorder %s154, %s155
    %p167 = scmp.eq.s32.totalorder %s19, 1
    %p168 = por %p166, %p167
    %p170 = scmp.ne.s32.totalorder %s155, %s169
    %p171 = scmp.eq.s32.totalorder %s19, 0
    %p172 = por %p170, %p171
    %s173 = ssub.s32 %s13, %s20
    %p174 = scmp.eq.s32.totalorder %s173, 0
    %s176 = sadd.s32 %s175, 1
    %s177 = scalar_select %p174, %s175, %s176
    %p180 = pneg %p174
    %p181 = scmp.eq.s32.totalorder %s13, 1
    %p182 = por %p180, %p181
    %p183 = scmp.ne.s32.totalorder %s175, %s178
    %p184 = scmp.eq.s32.totalorder %s13, 0
    %p185 = por %p183, %p184
    %p186 = scmp.ne.s32.totalorder %s175, %s178
    %p187 = scmp.eq.s32.totalorder %s18, 1
    %p188 = por %p186, %p187
    %p189 = scmp.ne.s32.totalorder %s178, %s179
    %p190 = scmp.eq.s32.totalorder %s18, 0
    %p191 = por %p189, %p190
    %p192 = scmp.ne.s32.totalorder %s178, %s179
    %p193 = scmp.eq.s32.totalorder %s19, 1
    %p194 = por %p192, %p193
    %p196 = scmp.ne.s32.totalorder %s179, %s195
    %p197 = scmp.eq.s32.totalorder %s19, 0
    %p198 = por %p196, %p197
    %p199 = scmp.le.s32.totalorder 1, %s13
    %p200 = scmp.lt.s32.totalorder %s13, 3
    %p201 = pnand %p199, %p200
    %p202 = pneg %p201
    // Predicated region
    $region9: #{tpu_custom_call.1} parent=5 // pred_check
      _
    $region10: #{tpu_custom_call.1} parent=5 // pred_check_branch
      %204 = sbr.rel (%p201) target = $region12
    $region11: #{tpu_custom_call.1} parent=5 // pred_region
      %s205 = ssub.s32 %s13, 1
      // Predicated region
      $region13: #{tpu_custom_call.1} parent=11 // pred_check
        %p206 = pneg %p60
      $region14: #{tpu_custom_call.1} parent=11 // pred_check_branch
        %208 = sbr.rel (%p206) target = $region16
      $region15: #{tpu_custom_call.1} parent=11 // pred_region
        _
      $region16: #{tpu_custom_call.1} parent=11 // pred_fallthru
        _
      // Predicated region
      $region17: #{tpu_custom_call.1} parent=11 // pred_check
        %p209 = pneg %p81
      $region18: #{tpu_custom_call.1} parent=11 // pred_check_branch
        %211 = sbr.rel (%p209) target = $region20
      $region19: #{tpu_custom_call.1} parent=11 // pred_region
        _
      $region20: #{tpu_custom_call.1} parent=11 // pred_fallthru
        _
      // Predicated region
      $region21: #{tpu_custom_call.1} parent=11 // pred_check
        %p212 = pneg %p102
      $region22: #{tpu_custom_call.1} parent=11 // pred_check_branch
        %214 = sbr.rel (%p212) target = $region24
      $region23: #{tpu_custom_call.1} parent=11 // pred_region
        _
      $region24: #{tpu_custom_call.1} parent=11 // pred_fallthru
        _
      // Predicated region
      $region25: #{tpu_custom_call.1} parent=11 // pred_check
        %p215 = pneg %p123
      $region26: #{tpu_custom_call.1} parent=11 // pred_check_branch
        %217 = sbr.rel (%p215) target = $region28
      $region27: #{tpu_custom_call.1} parent=11 // pred_region
        _
      $region28: #{tpu_custom_call.1} parent=11 // pred_fallthru
        _
      // Predicated region
      $region29: #{tpu_custom_call.1} parent=11 // pred_check
        %p218 = pneg %p144
      $region30: #{tpu_custom_call.1} parent=11 // pred_check_branch
        %220 = sbr.rel (%p218) target = $region32
      $region31: #{tpu_custom_call.1} parent=11 // pred_region
        _
      $region32: #{tpu_custom_call.1} parent=11 // pred_fallthru
        _
      // Predicated region
      $region33: #{tpu_custom_call.1} parent=11 // pred_check
        %p221 = pneg %p165
      $region34: #{tpu_custom_call.1} parent=11 // pred_check_branch
        %223 = sbr.rel (%p221) target = $region36
      $region35: #{tpu_custom_call.1} parent=11 // pred_region
        _
      $region36: #{tpu_custom_call.1} parent=11 // pred_fallthru
        _
    $region12: #{tpu_custom_call.1} parent=5 // pred_fallthru
      _
    %p224 = scmp.lt.s32.totalorder %s13, 2
    // Predicated region
    $region37: #{tpu_custom_call.1} parent=5 // pred_check
      %p225 = pneg %p224
    $region38: #{tpu_custom_call.1} parent=5 // pred_check_branch
      %227 = sbr.rel (%p225) target = $region40
    $region39: #{tpu_custom_call.1} parent=5 // pred_region
      // Predicated region
      $region41: #{tpu_custom_call.1} parent=39 // pred_check
        %p228 = pneg %p33
      $region42: #{tpu_custom_call.1} parent=39 // pred_check_branch
        %230 = sbr.rel (%p228) target = $region44
      $region43: #{tpu_custom_call.1} parent=39 // pred_region
        %p231 = scmp.lt.s32.totalorder %s13, 1
        %s232 = scalar_select %p231, %s13, 1
        %s233 = smul.addr %s232, 8
        %s234 = smul.addr %s233, 8
        %s235 = scalar_lea.vmem %s0, %s234
      $region44: #{tpu_custom_call.1} parent=39 // pred_fallthru
        _
    $region40: #{tpu_custom_call.1} parent=5 // pred_fallthru
      _
    %p236 = scmp.le.s32.totalorder 1, %s13
    %p237 = scmp.lt.s32.totalorder %s13, 3
    %p238 = pnand %p236, %p237
    %p239 = pneg %p238
    // Predicated region
    $region45: #{tpu_custom_call.1} parent=5 // pred_check
      _
    $region46: #{tpu_custom_call.1} parent=5 // pred_check_branch
      %241 = sbr.rel (%p238) target = $region48
    $region47: #{tpu_custom_call.1} parent=5 // pred_region
      %s242 = ssub.s32 %s13, 1
      %p243 = scmp.lt.s32.totalorder %s18, 1
      %s244 = scalar_select %p243, %s18, 1
      %s245 = smul.addr %s244, 8
      %s246 = smul.addr %s245, 8
      %s247 = scalar_lea.vmem %s0, %s246
      %p248 = pneg %p39
      %p249 = pneg %p36
      %p250 = pneg %p60
      %p251 = pneg %p57
      %p252 = pneg %p81
      %p253 = pneg %p78
      %p254 = pneg %p102
      %p255 = pneg %p99
      %p256 = pneg %p123
      %p257 = pneg %p120
      %p258 = pneg %p144
      %p259 = pneg %p141
      %p260 = pneg %p165
      %p261 = pneg %p162
      %p262 = pneg %p191
      %p263 = pneg %p188
      %p264 = scmp.lt.s32.totalorder %s18, 1
      %s265 = scalar_select %p264, %s18, 1
      %s266 = smul.addr %s265, 8
      %s267 = smul.addr %s266, 8
      %s268 = scalar_lea.vmem %s7, %s267
      %p269 = scmp.lt.s32.totalorder %s18, 1
      %s270 = scalar_select %p269, %s18, 1
      %s271 = smul.addr %s270, 8
      %s272 = smul.addr %s271, 8
      %s273 = scalar_lea.vmem %s0, %s272
      %p274 = scmp.lt.s32.totalorder %s18, 1
      %s275 = scalar_select %p274, %s18, 1
      %s276 = smul.addr %s275, 8
      %s277 = smul.addr %s276, 8
      %s278 = scalar_lea.vmem %s7, %s277
      %v279 = vld [vmem:[%s273] sm:$0xff]
      %v280 = vld [vmem:[%s273 + $0x8] sm:$0xff]
      %v281 = vld [vmem:[%s273 + $0x10] sm:$0xff]
      %v282 = vld [vmem:[%s273 + $0x18] sm:$0xff]
      %v283 = vld [vmem:[%s273 + $0x20] sm:$0xff]
      %v284 = vld [vmem:[%s273 + $0x28] sm:$0xff]
      %v285 = vld [vmem:[%s273 + $0x30] sm:$0xff]
      %v286 = vld [vmem:[%s273 + $0x38] sm:$0xff]
      %v287 = vld [vmem:[%s1] sm:$0xff]
      %v288 = vld [vmem:[%s1 + $0x8] sm:$0xff]
      %v289 = vld [vmem:[%s1 + $0x10] sm:$0xff]
      %v290 = vld [vmem:[%s1 + $0x18] sm:$0xff]
      %v291 = vld [vmem:[%s1 + $0x20] sm:$0xff]
      %v292 = vld [vmem:[%s1 + $0x28] sm:$0xff]
      %v293 = vld [vmem:[%s1 + $0x30] sm:$0xff]
      %v294 = vld [vmem:[%s1 + $0x38] sm:$0xff]
      %v295 = vld [vmem:[%s1 + $0x40] sm:$0xff]
      %v296 = vld [vmem:[%s1 + $0x48] sm:$0xff]
      %v297 = vld [vmem:[%s1 + $0x50] sm:$0xff]
      %v298 = vld [vmem:[%s1 + $0x58] sm:$0xff]
      %v299 = vld [vmem:[%s1 + $0x60] sm:$0xff]
      %v300 = vld [vmem:[%s1 + $0x68] sm:$0xff]
      %v301 = vld [vmem:[%s1 + $0x70] sm:$0xff]
      %v302 = vld [vmem:[%s1 + $0x78] sm:$0xff]
      %v303 = vld [vmem:[%s2] sm:$0xff]
      %v304 = vld [vmem:[%s2 + $0x8] sm:$0xff]
      %v305 = vld [vmem:[%s2 + $0x10] sm:$0xff]
      %v306 = vld [vmem:[%s2 + $0x18] sm:$0xff]
      %v307 = vld [vmem:[%s2 + $0x20] sm:$0xff]
      %v308 = vld [vmem:[%s2 + $0x28] sm:$0xff]
      %v309 = vld [vmem:[%s2 + $0x30] sm:$0xff]
      %v310 = vld [vmem:[%s2 + $0x38] sm:$0xff]
      %v311 = vld [vmem:[%s2 + $0x40] sm:$0xff]
      %v312 = vld [vmem:[%s2 + $0x48] sm:$0xff]
      %v313 = vld [vmem:[%s2 + $0x50] sm:$0xff]
      %v314 = vld [vmem:[%s2 + $0x58] sm:$0xff]
      %v315 = vld [vmem:[%s2 + $0x60] sm:$0xff]
      %v316 = vld [vmem:[%s2 + $0x68] sm:$0xff]
      %v317 = vld [vmem:[%s2 + $0x70] sm:$0xff]
      %v318 = vld [vmem:[%s2 + $0x78] sm:$0xff]
      %320 = vset.pattern.permute.xlu0 0
      %321 = vperm.xlu0 %320, %v303
      %v322 = vpop.permute.xlu0 %321
      %325 = vset.pattern.permute.xlu0 0
      %326 = vperm.xlu0 %325, %v304
      %v327 = vpop.permute.xlu0 %326
      %330 = vset.pattern.permute.xlu0 0
      %331 = vperm.xlu0 %330, %v305
      %v332 = vpop.permute.xlu0 %331
      %335 = vset.pattern.permute.xlu0 0
      %336 = vperm.xlu0 %335, %v306
      %v337 = vpop.permute.xlu0 %336
      %340 = vset.pattern.permute.xlu0 0
      %341 = vperm.xlu0 %340, %v307
      %v342 = vpop.permute.xlu0 %341
      %345 = vset.pattern.permute.xlu0 0
      %346 = vperm.xlu0 %345, %v308
      %v347 = vpop.permute.xlu0 %346
      %350 = vset.pattern.permute.xlu0 0
      %351 = vperm.xlu0 %350, %v309
      %v352 = vpop.permute.xlu0 %351
      %355 = vset.pattern.permute.xlu0 0
      %356 = vperm.xlu0 %355, %v310
      %v357 = vpop.permute.xlu0 %356
      %360 = vset.pattern.permute.xlu0 0
      %361 = vperm.xlu0 %360, %v311
      %v362 = vpop.permute.xlu0 %361
      %365 = vset.pattern.permute.xlu0 0
      %366 = vperm.xlu0 %365, %v312
      %v367 = vpop.permute.xlu0 %366
      %370 = vset.pattern.permute.xlu0 0
      %371 = vperm.xlu0 %370, %v313
      %v372 = vpop.permute.xlu0 %371
      %375 = vset.pattern.permute.xlu0 0
      %376 = vperm.xlu0 %375, %v314
      %v377 = vpop.permute.xlu0 %376
      %380 = vset.pattern.permute.xlu0 0
      %381 = vperm.xlu0 %380, %v315
      %v382 = vpop.permute.xlu0 %381
      %385 = vset.pattern.permute.xlu0 0
      %386 = vperm.xlu0 %385, %v316
      %v387 = vpop.permute.xlu0 %386
      %390 = vset.pattern.permute.xlu0 0
      %391 = vperm.xlu0 %390, %v317
      %v392 = vpop.permute.xlu0 %391
      %395 = vset.pattern.permute.xlu0 0
      %396 = vperm.xlu0 %395, %v318
      %v397 = vpop.permute.xlu0 %396
      %vm399 = vcmask 523264
      %v401 = vsel %vm399, %v287, 0
      %v404 = vsel %vm399, %v288, 0
      %v407 = vsel %vm399, %v289, 0
      %v410 = vsel %vm399, %v290, 0
      %v413 = vsel %vm399, %v291, 0
      %v416 = vsel %vm399, %v292, 0
      %v419 = vsel %vm399, %v293, 0
      %v422 = vsel %vm399, %v294, 0
      %v425 = vsel %vm399, %v295, 0
      %v428 = vsel %vm399, %v296, 0
      %v431 = vsel %vm399, %v297, 0
      %v434 = vsel %vm399, %v298, 0
      %v437 = vsel %vm399, %v299, 0
      %v440 = vsel %vm399, %v300, 0
      %v443 = vsel %vm399, %v301, 0
      %v446 = vsel %vm399, %v302, 0
      %448 = vmatprep.subr.mxu0 0.0
      %449 = vmatpush1.msra.mxu0 %v279
      %450 = vmatprep.subr.mxu0 0.0
      %451 = vmatpush1.msra.mxu0 %v280
      %452 = vmatprep.subr.mxu0 0.0
      %453 = vmatpush1.msra.mxu0 %v281
      %454 = vmatprep.subr.mxu0 0.0
      %455 = vmatpush1.msra.mxu0 %v282
      %456 = vmatprep.subr.mxu0 0.0
      %457 = vmatpush1.msra.mxu0 %v283
      %458 = vmatprep.subr.mxu0 0.0
      %459 = vmatpush1.msra.mxu0 %v284
      %460 = vmatprep.subr.mxu0 0.0
      %461 = vmatpush1.msra.mxu0 %v285
      %462 = vmatprep.subr.mxu0 0.0
      %463 = vmatpush1.msra.mxu0 %v286
      %464 = vmatprep.subr.mxu0 0.0
      %465 = vmatpush1.msra.mxu0 0.0
      %466 = vmatprep.subr.mxu0 0.0
      %467 = vmatpush1.msra.mxu0 0.0
      %468 = vmatprep.subr.mxu0 0.0
      %469 = vmatpush1.msra.mxu0 0.0
      %470 = vmatprep.subr.mxu0 0.0
      %471 = vmatpush1.msra.mxu0 0.0
      %472 = vmatprep.subr.mxu0 0.0
      %473 = vmatpush1.msra.mxu0 0.0
      %474 = vmatprep.subr.mxu0 0.0
      %475 = vmatpush1.msra.mxu0 0.0
      %476 = vmatprep.subr.mxu0 0.0
      %477 = vmatpush1.msra.mxu0 0.0
      %478 = vmatprep.subr.mxu0 0.0
      %479 = vmatpush1.msra.mxu0 0.0
      %480 = vmatprep.subr.mxu0 0.0
      %481 = vmatpush1.msra.mxu0 0.0
      %482 = vmatprep.subr.mxu0 0.0
      %483 = vmatpush1.msra.mxu0 0.0
      %484 = vmatprep.subr.mxu0 0.0
      %485 = vmatpush1.msra.mxu0 0.0
      %486 = vmatprep.subr.mxu0 0.0
      %487 = vmatpush1.msra.mxu0 0.0
      %488 = vmatprep.subr.mxu0 0.0
      %489 = vmatpush1.msra.mxu0 0.0
      %490 = vmatprep.subr.mxu0 0.0
      %491 = vmatpush1.msra.mxu0 0.0
      %492 = vmatprep.subr.mxu0 0.0
      %493 = vmatpush1.msra.mxu0 0.0
      %494 = vmatprep.subr.mxu0 0.0
      %495 = vmatpush1.msra.mxu0 0.0
      %496 = vmatprep.subr.mxu0 0.0
      %497 = vmatpush1.msra.mxu0 0.0
      %498 = vmatprep.subr.mxu0 0.0
      %499 = vmatpush1.msra.mxu0 0.0
      %500 = vmatprep.subr.mxu0 0.0
      %501 = vmatpush1.msra.mxu0 0.0
      %502 = vmatprep.subr.mxu0 0.0
      %503 = vmatpush1.msra.mxu0 0.0
      %504 = vmatprep.subr.mxu0 0.0
      %505 = vmatpush1.msra.mxu0 0.0
      %506 = vmatprep.subr.mxu0 0.0
      %507 = vmatpush1.msra.mxu0 0.0
      %508 = vmatprep.subr.mxu0 0.0
      %509 = vmatpush1.msra.mxu0 0.0
      %510 = vmatprep.subr.mxu0 0.0
      %511 = vmatpush1.msra.mxu0 0.0
      %512 = vmatprep.mubr.f32.mxu0 0.0
      %513 = vmatmul.mubr.f32.gmra.mrb[0].mxu0 %v401
      %v514 = vpop.f32.mrb[0].mxu0
      %v515 = vadd.f32 %v322, %v514
      %v516 = vpop.f32.mrb[0].mxu0
      %517 = vmatprep.mubr.f32.mxu0 0.0
      %518 = vmatmul.mubr.f32.gmra.mrb[0].mxu0 %v404
      %v519 = vpop.f32.mrb[0].mxu0
      %v520 = vadd.f32 %v327, %v519
      %v521 = vpop.f32.mrb[0].mxu0
      %522 = vmatprep.mubr.f32.mxu0 0.0
      %523 = vmatmul.mubr.f32.gmra.mrb[0].mxu0 %v407
      %v524 = vpop.f32.mrb[0].mxu0
      %v525 = vadd.f32 %v332, %v524
      %v526 = vpop.f32.mrb[0].mxu0
      %527 = vmatprep.mubr.f32.mxu0 0.0
      %528 = vmatmul.mubr.f32.gmra.mrb[0].mxu0 %v410
      %v529 = vpop.f32.mrb[0].mxu0
      %v530 = vadd.f32 %v337, %v529
      %v531 = vpop.f32.mrb[0].mxu0
      %532 = vmatprep.mubr.f32.mxu0 0.0
      %533 = vmatmul.mubr.f32.gmra.mrb[0].mxu0 %v413
      %v534 = vpop.f32.mrb[0].mxu0
      %v535 = vadd.f32 %v342, %v534
      %v536 = vpop.f32.mrb[0].mxu0
      %537 = vmatprep.mubr.f32.mxu0 0.0
      %538 = vmatmul.mubr.f32.gmra.mrb[0].mxu0 %v416
      %v539 = vpop.f32.mrb[0].mxu0
      %v540 = vadd.f32 %v347, %v539
      %v541 = vpop.f32.mrb[0].mxu0
      %542 = vmatprep.mubr.f32.mxu0 0.0
      %543 = vmatmul.mubr.f32.gmra.mrb[0].mxu0 %v419
      %v544 = vpop.f32.mrb[0].mxu0
      %v545 = vadd.f32 %v352, %v544
      %v546 = vpop.f32.mrb[0].mxu0
      %547 = vmatprep.mubr.f32.mxu0 0.0
      %548 = vmatmul.mubr.f32.gmra.mrb[0].mxu0 %v422
      %v549 = vpop.f32.mrb[0].mxu0
      %v550 = vadd.f32 %v357, %v549
      %v551 = vpop.f32.mrb[0].mxu0
      %552 = vmatprep.mubr.f32.mxu0 0.0
      %553 = vmatmul.mubr.f32.gmra.mrb[0].mxu0 %v425
      %v554 = vpop.f32.mrb[0].mxu0
      %v555 = vadd.f32 %v362, %v554
      %v556 = vpop.f32.mrb[0].mxu0
      %557 = vmatprep.mubr.f32.mxu0 0.0
      %558 = vmatmul.mubr.f32.gmra.mrb[0].mxu0 %v428
      %v559 = vpop.f32.mrb[0].mxu0
      %v560 = vadd.f32 %v367, %v559
      %v561 = vpop.f32.mrb[0].mxu0
      %562 = vmatprep.mubr.f32.mxu0 0.0
      %563 = vmatmul.mubr.f32.gmra.mrb[0].mxu0 %v431
      %v564 = vpop.f32.mrb[0].mxu0
      %v565 = vadd.f32 %v372, %v564
      %v566 = vpop.f32.mrb[0].mxu0
      %567 = vmatprep.mubr.f32.mxu0 0.0
      %568 = vmatmul.mubr.f32.gmra.mrb[0].mxu0 %v434
      %v569 = vpop.f32.mrb[0].mxu0
      %v570 = vadd.f32 %v377, %v569
      %v571 = vpop.f32.mrb[0].mxu0
      %572 = vmatprep.mubr.f32.mxu0 0.0
      %573 = vmatmul.mubr.f32.gmra.mrb[0].mxu0 %v437
      %v574 = vpop.f32.mrb[0].mxu0
      %v575 = vadd.f32 %v382, %v574
      %v576 = vpop.f32.mrb[0].mxu0
      %577 = vmatprep.mubr.f32.mxu0 0.0
      %578 = vmatmul.mubr.f32.gmra.mrb[0].mxu0 %v440
      %v579 = vpop.f32.mrb[0].mxu0
      %v580 = vadd.f32 %v387, %v579
      %v581 = vpop.f32.mrb[0].mxu0
      %582 = vmatprep.mubr.f32.mxu0 0.0
      %583 = vmatmul.mubr.f32.gmra.mrb[0].mxu0 %v443
      %v584 = vpop.f32.mrb[0].mxu0
      %v585 = vadd.f32 %v392, %v584
      %v586 = vpop.f32.mrb[0].mxu0
      %587 = vmatprep.mubr.f32.mxu0 0.0
      %588 = vmatmul.mubr.f32.gmra.mrb[0].mxu0 %v446
      %v589 = vpop.f32.mrb[0].mxu0
      %v590 = vadd.f32 %v397, %v589
      %v591 = vpop.f32.mrb[0].mxu0
      %592 = vdwg.mxu0
      %v593 = vmax.f32 %v515, 0.0
      %v594 = vmax.f32 %v520, 0.0
      %v595 = vmax.f32 %v525, 0.0
      %v596 = vmax.f32 %v530, 0.0
      %v597 = vmax.f32 %v535, 0.0
      %v598 = vmax.f32 %v540, 0.0
      %v599 = vmax.f32 %v545, 0.0
      %v600 = vmax.f32 %v550, 0.0
      %v601 = vmax.f32 %v555, 0.0
      %v602 = vmax.f32 %v560, 0.0
      %v603 = vmax.f32 %v565, 0.0
      %v604 = vmax.f32 %v570, 0.0
      %v605 = vmax.f32 %v575, 0.0
      %v606 = vmax.f32 %v580, 0.0
      %v607 = vmax.f32 %v585, 0.0
      %v608 = vmax.f32 %v590, 0.0
      %v609 = vld [vmem:[%s3] sm:$0xff]
      %v610 = vld [vmem:[%s3 + $0x8] sm:$0xff]
      %v611 = vld [vmem:[%s3 + $0x10] sm:$0xff]
      %v612 = vld [vmem:[%s3 + $0x18] sm:$0xff]
      %v613 = vld [vmem:[%s3 + $0x20] sm:$0xff]
      %v614 = vld [vmem:[%s3 + $0x28] sm:$0xff]
      %v615 = vld [vmem:[%s3 + $0x30] sm:$0xff]
      %v616 = vld [vmem:[%s3 + $0x38] sm:$0xff]
      %v617 = vld [vmem:[%s3 + $0x40] sm:$0xff]
      %v618 = vld [vmem:[%s3 + $0x48] sm:$0xff]
      %v619 = vld [vmem:[%s3 + $0x50] sm:$0xff]
      %v620 = vld [vmem:[%s3 + $0x58] sm:$0xff]
      %v621 = vld [vmem:[%s3 + $0x60] sm:$0xff]
      %v622 = vld [vmem:[%s3 + $0x68] sm:$0xff]
      %v623 = vld [vmem:[%s3 + $0x70] sm:$0xff]
      %v624 = vld [vmem:[%s3 + $0x78] sm:$0xff]
      %v625 = vld [vmem:[%s4] sm:$0xff]
      %v626 = vld [vmem:[%s4 + $0x8] sm:$0xff]
      %v627 = vld [vmem:[%s4 + $0x10] sm:$0xff]
      %v628 = vld [vmem:[%s4 + $0x18] sm:$0xff]
      %v629 = vld [vmem:[%s4 + $0x20] sm:$0xff]
      %v630 = vld [vmem:[%s4 + $0x28] sm:$0xff]
      %v631 = vld [vmem:[%s4 + $0x30] sm:$0xff]
      %v632 = vld [vmem:[%s4 + $0x38] sm:$0xff]
      %v633 = vld [vmem:[%s4 + $0x40] sm:$0xff]
      %v634 = vld [vmem:[%s4 + $0x48] sm:$0xff]
      %v635 = vld [vmem:[%s4 + $0x50] sm:$0xff]
      %v636 = vld [vmem:[%s4 + $0x58] sm:$0xff]
      %v637 = vld [vmem:[%s4 + $0x60] sm:$0xff]
      %v638 = vld [vmem:[%s4 + $0x68] sm:$0xff]
      %v639 = vld [vmem:[%s4 + $0x70] sm:$0xff]
      %v640 = vld [vmem:[%s4 + $0x78] sm:$0xff]
      %642 = vset.pattern.permute.xlu0 0
      %643 = vperm.xlu0 %642, %v625
      %v644 = vpop.permute.xlu0 %643
      %647 = vset.pattern.permute.xlu0 0
      %648 = vperm.xlu0 %647, %v626
      %v649 = vpop.permute.xlu0 %648
      %652 = vset.pattern.permute.xlu0 0
      %653 = vperm.xlu0 %652, %v627
      %v654 = vpop.permute.xlu0 %653
      %657 = vset.pattern.permute.xlu0 0
      %658 = vperm.xlu0 %657, %v628
      %v659 = vpop.permute.xlu0 %658
      %662 = vset.pattern.permute.xlu0 0
      %663 = vperm.xlu0 %662, %v629
      %v664 = vpop.permute.xlu0 %663
      %667 = vset.pattern.permute.xlu0 0
      %668 = vperm.xlu0 %667, %v630
      %v669 = vpop.permute.xlu0 %668
      %672 = vset.pattern.permute.xlu0 0
      %673 = vperm.xlu0 %672, %v631
      %v674 = vpop.permute.xlu0 %673
      %677 = vset.pattern.permute.xlu0 0
      %678 = vperm.xlu0 %677, %v632
      %v679 = vpop.permute.xlu0 %678
      %682 = vset.pattern.permute.xlu0 0
      %683 = vperm.xlu0 %682, %v633
      %v684 = vpop.permute.xlu0 %683
      %687 = vset.pattern.permute.xlu0 0
      %688 = vperm.xlu0 %687, %v634
      %v689 = vpop.permute.xlu0 %688
      %692 = vset.pattern.permute.xlu0 0
      %693 = vperm.xlu0 %692, %v635
      %v694 = vpop.permute.xlu0 %693
      %697 = vset.pattern.permute.xlu0 0
      %698 = vperm.xlu0 %697, %v636
      %v699 = vpop.permute.xlu0 %698
      %702 = vset.pattern.permute.xlu0 0
      %703 = vperm.xlu0 %702, %v637
      %v704 = vpop.permute.xlu0 %703
      %707 = vset.pattern.permute.xlu0 0
      %708 = vperm.xlu0 %707, %v638
      %v709 = vpop.permute.xlu0 %708
      %712 = vset.pattern.permute.xlu0 0
      %713 = vperm.xlu0 %712, %v639
      %v714 = vpop.permute.xlu0 %713
      %717 = vset.pattern.permute.xlu0 0
      %718 = vperm.xlu0 %717, %v640
      %v719 = vpop.permute.xlu0 %718
      %721 = vmatprep.subr.mxu0 0.0
      %722 = vmatpush1.msra.mxu0 %v593
      %723 = vmatprep.subr.mxu0 0.0
      %724 = vmatpush1.msra.mxu0 %v594
      %725 = vmatprep.subr.mxu0 0.0
      %726 = vmatpush1.msra.mxu0 %v595
      %727 = vmatprep.subr.mxu0 0.0
      %728 = vmatpush1.msra.mxu0 %v596
      %729 = vmatprep.subr.mxu0 0.0
      %730 = vmatpush1.msra.mxu0 %v597
      %731 = vmatprep.subr.mxu0 0.0
      %732 = vmatpush1.msra.mxu0 %v598
      %733 = vmatprep.subr.mxu0 0.0
      %734 = vmatpush1.msra.mxu0 %v599
      %735 = vmatprep.subr.mxu0 0.0
      %736 = vmatpush1.msra.mxu0 %v600
      %737 = vmatprep.subr.mxu0 0.0
      %738 = vmatpush1.msra.mxu0 %v601
      %739 = vmatprep.subr.mxu0 0.0
      %740 = vmatpush1.msra.mxu0 %v602
      %741 = vmatprep.subr.mxu0 0.0
      %742 = vmatpush1.msra.mxu0 %v603
      %743 = vmatprep.subr.mxu0 0.0
      %744 = vmatpush1.msra.mxu0 %v604
      %745 = vmatprep.subr.mxu0 0.0
      %746 = vmatpush1.msra.mxu0 %v605
      %747 = vmatprep.subr.mxu0 0.0
      %748 = vmatpush1.msra.mxu0 %v606
      %749 = vmatprep.subr.mxu0 0.0
      %750 = vmatpush1.msra.mxu0 %v607
      %751 = vmatprep.subr.mxu0 0.0
      %752 = vmatpush1.msra.mxu0 %v608
      %753 = vmatprep.subr.mxu0 0.0
      %754 = vmatpush1.msra.mxu0 0.0
      %755 = vmatprep.subr.mxu0 0.0
      %756 = vmatpush1.msra.mxu0 0.0
      %757 = vmatprep.subr.mxu0 0.0
      %758 = vmatpush1.msra.mxu0 0.0
      %759 = vmatprep.subr.mxu0 0.0
      %760 = vmatpush1.msra.mxu0 0.0
      %761 = vmatprep.subr.mxu0 0.0
      %762 = vmatpush1.msra.mxu0 0.0
      %763 = vmatprep.subr.mxu0 0.0
      %764 = vmatpush1.msra.mxu0 0.0
      %765 = vmatprep.subr.mxu0 0.0
      %766 = vmatpush1.msra.mxu0 0.0
      %767 = vmatprep.subr.mxu0 0.0
      %768 = vmatpush1.msra.mxu0 0.0
      %769 = vmatprep.subr.mxu0 0.0
      %770 = vmatpush1.msra.mxu0 0.0
      %771 = vmatprep.subr.mxu0 0.0
      %772 = vmatpush1.msra.mxu0 0.0
      %773 = vmatprep.subr.mxu0 0.0
      %774 = vmatpush1.msra.mxu0 0.0
      %775 = vmatprep.subr.mxu0 0.0
      %776 = vmatpush1.msra.mxu0 0.0
      %777 = vmatprep.subr.mxu0 0.0
      %778 = vmatpush1.msra.mxu0 0.0
      %779 = vmatprep.subr.mxu0 0.0
      %780 = vmatpush1.msra.mxu0 0.0
      %781 = vmatprep.subr.mxu0 0.0
      %782 = vmatpush1.msra.mxu0 0.0
      %783 = vmatprep.subr.mxu0 0.0
      %784 = vmatpush1.msra.mxu0 0.0
      %785 = vmatprep.mubr.f32.mxu0 0.0
      %786 = vmatmul.mubr.f32.gmra.mrb[0].mxu0 %v609
      %v787 = vpop.f32.mrb[0].mxu0
      %v788 = vadd.f32 %v644, %v787
      %v789 = vpop.f32.mrb[0].mxu0
      %790 = vmatprep.mubr.f32.mxu0 0.0
      %791 = vmatmul.mubr.f32.gmra.mrb[0].mxu0 %v610
      %v792 = vpop.f32.mrb[0].mxu0
      %v793 = vadd.f32 %v649, %v792
      %v794 = vpop.f32.mrb[0].mxu0
      %795 = vmatprep.mubr.f32.mxu0 0.0
      %796 = vmatmul.mubr.f32.gmra.mrb[0].mxu0 %v611
      %v797 = vpop.f32.mrb[0].mxu0
      %v798 = vadd.f32 %v654, %v797
      %v799 = vpop.f32.mrb[0].mxu0
      %800 = vmatprep.mubr.f32.mxu0 0.0
      %801 = vmatmul.mubr.f32.gmra.mrb[0].mxu0 %v612
      %v802 = vpop.f32.mrb[0].mxu0
      %v803 = vadd.f32 %v659, %v802
      %v804 = vpop.f32.mrb[0].mxu0
      %805 = vmatprep.mubr.f32.mxu0 0.0
      %806 = vmatmul.mubr.f32.gmra.mrb[0].mxu0 %v613
      %v807 = vpop.f32.mrb[0].mxu0
      %v808 = vadd.f32 %v664, %v807
      %v809 = vpop.f32.mrb[0].mxu0
      %810 = vmatprep.mubr.f32.mxu0 0.0
      %811 = vmatmul.mubr.f32.gmra.mrb[0].mxu0 %v614
      %v812 = vpop.f32.mrb[0].mxu0
      %v813 = vadd.f32 %v669, %v812
      %v814 = vpop.f32.mrb[0].mxu0
      %815 = vmatprep.mubr.f32.mxu0 0.0
      %816 = vmatmul.mubr.f32.gmra.mrb[0].mxu0 %v615
      %v817 = vpop.f32.mrb[0].mxu0
      %v818 = vadd.f32 %v674, %v817
      %v819 = vpop.f32.mrb[0].mxu0
      %820 = vmatprep.mubr.f32.mxu0 0.0
      %821 = vmatmul.mubr.f32.gmra.mrb[0].mxu0 %v616
      %v822 = vpop.f32.mrb[0].mxu0
      %v823 = vadd.f32 %v679, %v822
      %v824 = vpop.f32.mrb[0].mxu0
      %825 = vmatprep.mubr.f32.mxu0 0.0
      %826 = vmatmul.mubr.f32.gmra.mrb[0].mxu0 %v617
      %v827 = vpop.f32.mrb[0].mxu0
      %v828 = vadd.f32 %v684, %v827
      %v829 = vpop.f32.mrb[0].mxu0
      %830 = vmatprep.mubr.f32.mxu0 0.0
      %831 = vmatmul.mubr.f32.gmra.mrb[0].mxu0 %v618
      %v832 = vpop.f32.mrb[0].mxu0
      %v833 = vadd.f32 %v689, %v832
      %v834 = vpop.f32.mrb[0].mxu0
      %835 = vmatprep.mubr.f32.mxu0 0.0
      %836 = vmatmul.mubr.f32.gmra.mrb[0].mxu0 %v619
      %v837 = vpop.f32.mrb[0].mxu0
      %v838 = vadd.f32 %v694, %v837
      %v839 = vpop.f32.mrb[0].mxu0
      %840 = vmatprep.mubr.f32.mxu0 0.0
      %841 = vmatmul.mubr.f32.gmra.mrb[0].mxu0 %v620
      %v842 = vpop.f32.mrb[0].mxu0
      %v843 = vadd.f32 %v699, %v842
      %v844 = vpop.f32.mrb[0].mxu0
      %845 = vmatprep.mubr.f32.mxu0 0.0
      %846 = vmatmul.mubr.f32.gmra.mrb[0].mxu0 %v621
      %v847 = vpop.f32.mrb[0].mxu0
      %v848 = vadd.f32 %v704, %v847
      %v849 = vpop.f32.mrb[0].mxu0
      %850 = vmatprep.mubr.f32.mxu0 0.0
      %851 = vmatmul.mubr.f32.gmra.mrb[0].mxu0 %v622
      %v852 = vpop.f32.mrb[0].mxu0
      %v853 = vadd.f32 %v709, %v852
      %v854 = vpop.f32.mrb[0].mxu0
      %855 = vmatprep.mubr.f32.mxu0 0.0
      %856 = vmatmul.mubr.f32.gmra.mrb[0].mxu0 %v623
      %v857 = vpop.f32.mrb[0].mxu0
      %v858 = vadd.f32 %v714, %v857
      %v859 = vpop.f32.mrb[0].mxu0
      %860 = vmatprep.mubr.f32.mxu0 0.0
      %861 = vmatmul.mubr.f32.gmra.mrb[0].mxu0 %v624
      %v862 = vpop.f32.mrb[0].mxu0
      %v863 = vadd.f32 %v719, %v862
      %v864 = vpop.f32.mrb[0].mxu0
      %865 = vdwg.mxu0
      %v866 = vmax.f32 %v788, 0.0
      %v867 = vmax.f32 %v793, 0.0
      %v868 = vmax.f32 %v798, 0.0
      %v869 = vmax.f32 %v803, 0.0
      %v870 = vmax.f32 %v808, 0.0
      %v871 = vmax.f32 %v813, 0.0
      %v872 = vmax.f32 %v818, 0.0
      %v873 = vmax.f32 %v823, 0.0
      %v874 = vmax.f32 %v828, 0.0
      %v875 = vmax.f32 %v833, 0.0
      %v876 = vmax.f32 %v838, 0.0
      %v877 = vmax.f32 %v843, 0.0
      %v878 = vmax.f32 %v848, 0.0
      %v879 = vmax.f32 %v853, 0.0
      %v880 = vmax.f32 %v858, 0.0
      %v881 = vmax.f32 %v863, 0.0
      %v882 = vld [vmem:[%s5] sm:$0xff]
      %v883 = vld [vmem:[%s5 + $0x8] sm:$0xff]
      %v884 = vld [vmem:[%s5 + $0x10] sm:$0xff]
      %v885 = vld [vmem:[%s5 + $0x18] sm:$0xff]
      %v886 = vld [vmem:[%s5 + $0x20] sm:$0xff]
      %v887 = vld [vmem:[%s5 + $0x28] sm:$0xff]
      %v888 = vld [vmem:[%s5 + $0x30] sm:$0xff]
      %v889 = vld [vmem:[%s5 + $0x38] sm:$0xff]
      %v890 = vld [vmem:[%s6] sm:$0xff]
      %v891 = vld [vmem:[%s6 + $0x8] sm:$0xff]
      %v892 = vld [vmem:[%s6 + $0x10] sm:$0xff]
      %v893 = vld [vmem:[%s6 + $0x18] sm:$0xff]
      %v894 = vld [vmem:[%s6 + $0x20] sm:$0xff]
      %v895 = vld [vmem:[%s6 + $0x28] sm:$0xff]
      %v896 = vld [vmem:[%s6 + $0x30] sm:$0xff]
      %v897 = vld [vmem:[%s6 + $0x38] sm:$0xff]
      %899 = vset.pattern.permute.xlu0 0
      %900 = vperm.xlu0 %899, %v890
      %v901 = vpop.permute.xlu0 %900
      %904 = vset.pattern.permute.xlu0 0
      %905 = vperm.xlu0 %904, %v891
      %v906 = vpop.permute.xlu0 %905
      %909 = vset.pattern.permute.xlu0 0
      %910 = vperm.xlu0 %909, %v892
      %v911 = vpop.permute.xlu0 %910
      %914 = vset.pattern.permute.xlu0 0
      %915 = vperm.xlu0 %914, %v893
      %v916 = vpop.permute.xlu0 %915
      %919 = vset.pattern.permute.xlu0 0
      %920 = vperm.xlu0 %919, %v894
      %v921 = vpop.permute.xlu0 %920
      %924 = vset.pattern.permute.xlu0 0
      %925 = vperm.xlu0 %924, %v895
      %v926 = vpop.permute.xlu0 %925
      %929 = vset.pattern.permute.xlu0 0
      %930 = vperm.xlu0 %929, %v896
      %v931 = vpop.permute.xlu0 %930
      %934 = vset.pattern.permute.xlu0 0
      %935 = vperm.xlu0 %934, %v897
      %v936 = vpop.permute.xlu0 %935
      %938 = vmatprep.subr.mxu0 0.0
      %939 = vmatpush1.msra.mxu0 %v866
      %940 = vmatprep.subr.mxu0 0.0
      %941 = vmatpush1.msra.mxu0 %v867
      %942 = vmatprep.subr.mxu0 0.0
      %943 = vmatpush1.msra.mxu0 %v868
      %944 = vmatprep.subr.mxu0 0.0
      %945 = vmatpush1.msra.mxu0 %v869
      %946 = vmatprep.subr.mxu0 0.0
      %947 = vmatpush1.msra.mxu0 %v870
      %948 = vmatprep.subr.mxu0 0.0
      %949 = vmatpush1.msra.mxu0 %v871
      %950 = vmatprep.subr.mxu0 0.0
      %951 = vmatpush1.msra.mxu0 %v872
      %952 = vmatprep.subr.mxu0 0.0
      %953 = vmatpush1.msra.mxu0 %v873
      %954 = vmatprep.subr.mxu0 0.0
      %955 = vmatpush1.msra.mxu0 %v874
      %956 = vmatprep.subr.mxu0 0.0
      %957 = vmatpush1.msra.mxu0 %v875
      %958 = vmatprep.subr.mxu0 0.0
      %959 = vmatpush1.msra.mxu0 %v876
      %960 = vmatprep.subr.mxu0 0.0
      %961 = vmatpush1.msra.mxu0 %v877
      %962 = vmatprep.subr.mxu0 0.0
      %963 = vmatpush1.msra.mxu0 %v878
      %964 = vmatprep.subr.mxu0 0.0
      %965 = vmatpush1.msra.mxu0 %v879
      %966 = vmatprep.subr.mxu0 0.0
      %967 = vmatpush1.msra.mxu0 %v880
      %968 = vmatprep.subr.mxu0 0.0
      %969 = vmatpush1.msra.mxu0 %v881
      %970 = vmatprep.subr.mxu0 0.0
      %971 = vmatpush1.msra.mxu0 0.0
      %972 = vmatprep.subr.mxu0 0.0
      %973 = vmatpush1.msra.mxu0 0.0
      %974 = vmatprep.subr.mxu0 0.0
      %975 = vmatpush1.msra.mxu0 0.0
      %976 = vmatprep.subr.mxu0 0.0
      %977 = vmatpush1.msra.mxu0 0.0
      %978 = vmatprep.subr.mxu0 0.0
      %979 = vmatpush1.msra.mxu0 0.0
      %980 = vmatprep.subr.mxu0 0.0
      %981 = vmatpush1.msra.mxu0 0.0
      %982 = vmatprep.subr.mxu0 0.0
      %983 = vmatpush1.msra.mxu0 0.0
      %984 = vmatprep.subr.mxu0 0.0
      %985 = vmatpush1.msra.mxu0 0.0
      %986 = vmatprep.subr.mxu0 0.0
      %987 = vmatpush1.msra.mxu0 0.0
      %988 = vmatprep.subr.mxu0 0.0
      %989 = vmatpush1.msra.mxu0 0.0
      %990 = vmatprep.subr.mxu0 0.0
      %991 = vmatpush1.msra.mxu0 0.0
      %992 = vmatprep.subr.mxu0 0.0
      %993 = vmatpush1.msra.mxu0 0.0
      %994 = vmatprep.subr.mxu0 0.0
      %995 = vmatpush1.msra.mxu0 0.0
      %996 = vmatprep.subr.mxu0 0.0
      %997 = vmatpush1.msra.mxu0 0.0
      %998 = vmatprep.subr.mxu0 0.0
      %999 = vmatpush1.msra.mxu0 0.0
      %1000 = vmatprep.subr.mxu0 0.0
      %1001 = vmatpush1.msra.mxu0 0.0
      %1002 = vmatprep.mubr.f32.mxu0 0.0
      %1003 = vmatmul.mubr.f32.gmra.mrb[0].mxu0 %v882
      %v1004 = vpop.f32.mrb[0].mxu0
      %v1005 = vadd.f32 %v901, %v1004
      %v1006 = vpop.f32.mrb[0].mxu0
      %1007 = vmatprep.mubr.f32.mxu0 0.0
      %1008 = vmatmul.mubr.f32.gmra.mrb[0].mxu0 %v883
      %v1009 = vpop.f32.mrb[0].mxu0
      %v1010 = vadd.f32 %v906, %v1009
      %v1011 = vpop.f32.mrb[0].mxu0
      %1012 = vmatprep.mubr.f32.mxu0 0.0
      %1013 = vmatmul.mubr.f32.gmra.mrb[0].mxu0 %v884
      %v1014 = vpop.f32.mrb[0].mxu0
      %v1015 = vadd.f32 %v911, %v1014
      %v1016 = vpop.f32.mrb[0].mxu0
      %1017 = vmatprep.mubr.f32.mxu0 0.0
      %1018 = vmatmul.mubr.f32.gmra.mrb[0].mxu0 %v885
      %v1019 = vpop.f32.mrb[0].mxu0
      %v1020 = vadd.f32 %v916, %v1019
      %v1021 = vpop.f32.mrb[0].mxu0
      %1022 = vmatprep.mubr.f32.mxu0 0.0
      %1023 = vmatmul.mubr.f32.gmra.mrb[0].mxu0 %v886
      %v1024 = vpop.f32.mrb[0].mxu0
      %v1025 = vadd.f32 %v921, %v1024
      %v1026 = vpop.f32.mrb[0].mxu0
      %1027 = vmatprep.mubr.f32.mxu0 0.0
      %1028 = vmatmul.mubr.f32.gmra.mrb[0].mxu0 %v887
      %v1029 = vpop.f32.mrb[0].mxu0
      %v1030 = vadd.f32 %v926, %v1029
      %v1031 = vpop.f32.mrb[0].mxu0
      %1032 = vmatprep.mubr.f32.mxu0 0.0
      %1033 = vmatmul.mubr.f32.gmra.mrb[0].mxu0 %v888
      %v1034 = vpop.f32.mrb[0].mxu0
      %v1035 = vadd.f32 %v931, %v1034
      %v1036 = vpop.f32.mrb[0].mxu0
      %1037 = vmatprep.mubr.f32.mxu0 0.0
      %1038 = vmatmul.mubr.f32.gmra.mrb[0].mxu0 %v889
      %v1039 = vpop.f32.mrb[0].mxu0
      %v1040 = vadd.f32 %v936, %v1039
      %v1041 = vpop.f32.mrb[0].mxu0
      %1042 = vdwg.mxu0
      %1043 = vxpose.xlu0.b32.start [1/16] %v1005, 128
      %1044 = vxpose.xlu0.b32.cont [2/16] %v1010, 128
      %1045 = vxpose.xlu0.b32.cont [3/16] %v1015, 128
      %1046 = vxpose.xlu0.b32.cont [4/16] %v1020, 128
      %1047 = vxpose.xlu0.b32.cont [5/16] %v1025, 128
      %1048 = vxpose.xlu0.b32.cont [6/16] %v1030, 128
      %1049 = vxpose.xlu0.b32.cont [7/16] %v1035, 128
      %1050 = vxpose.xlu0.b32.cont [8/16] %v1040, 128
      %1051 = vxpose.xlu0.b32.cont [9/16] 0.0, 128
      %1052 = vxpose.xlu0.b32.cont [10/16] 0.0, 128
      %1053 = vxpose.xlu0.b32.cont [11/16] 0.0, 128
      %1054 = vxpose.xlu0.b32.cont [12/16] 0.0, 128
      %1055 = vxpose.xlu0.b32.cont [13/16] 0.0, 128
      %1056 = vxpose.xlu0.b32.cont [14/16] 0.0, 128
      %1057 = vxpose.xlu0.b32.cont [15/16] 0.0, 128
      %1058 = vxpose.xlu0.b32.end [16/16] 0.0, 128
      %v1059 = vpop.trf.xlu0
      %v1060 = vpop.trf.xlu0
      %v1061 = vpop.trf.xlu0
      %v1062 = vpop.trf.xlu0
      %v1063 = vpop.trf.xlu0
      %v1064 = vpop.trf.xlu0
      %v1065 = vpop.trf.xlu0
      %v1066 = vpop.trf.xlu0
      %v1067 = vpop.trf.xlu0
      %v1068 = vpop.trf.xlu0
      %v1069 = vpop.trf.xlu0
      %v1070 = vpop.trf.xlu0
      %v1071 = vpop.trf.xlu0
      %v1072 = vpop.trf.xlu0
      %v1073 = vpop.trf.xlu0
      %v1074 = vpop.trf.xlu0
      %v1076 = vsel %vm399, %v1059, 0
      %v1079 = vsel %vm399, %v1060, 0
      %1081 = vmatprep.subr.mxu0 0.0
      %1082 = vmatpush1.msra.mxu0 %v1005
      %1083 = vmatprep.subr.mxu0 0.0
      %1084 = vmatpush1.msra.mxu0 %v1010
      %1085 = vmatprep.subr.mxu0 0.0
      %1086 = vmatpush1.msra.mxu0 %v1015
      %1087 = vmatprep.subr.mxu0 0.0
      %1088 = vmatpush1.msra.mxu0 %v1020
      %1089 = vmatprep.subr.mxu0 0.0
      %1090 = vmatpush1.msra.mxu0 %v1025
      %1091 = vmatprep.subr.mxu0 0.0
      %1092 = vmatpush1.msra.mxu0 %v1030
      %1093 = vmatprep.subr.mxu0 0.0
      %1094 = vmatpush1.msra.mxu0 %v1035
      %1095 = vmatprep.subr.mxu0 0.0
      %1096 = vmatpush1.msra.mxu0 %v1040
      %1097 = vmatprep.subr.mxu0 0.0
      %1098 = vmatpush1.msra.mxu0 0.0
      %1099 = vmatprep.subr.mxu0 0.0
      %1100 = vmatpush1.msra.mxu0 0.0
      %1101 = vmatprep.subr.mxu0 0.0
      %1102 = vmatpush1.msra.mxu0 0.0
      %1103 = vmatprep.subr.mxu0 0.0
      %1104 = vmatpush1.msra.mxu0 0.0
      %1105 = vmatprep.subr.mxu0 0.0
      %1106 = vmatpush1.msra.mxu0 0.0
      %1107 = vmatprep.subr.mxu0 0.0
      %1108 = vmatpush1.msra.mxu0 0.0
      %1109 = vmatprep.subr.mxu0 0.0
      %1110 = vmatpush1.msra.mxu0 0.0
      %1111 = vmatprep.subr.mxu0 0.0
      %1112 = vmatpush1.msra.mxu0 0.0
      %1113 = vmatprep.subr.mxu0 0.0
      %1114 = vmatpush1.msra.mxu0 0.0
      %1115 = vmatprep.subr.mxu0 0.0
      %1116 = vmatpush1.msra.mxu0 0.0
      %1117 = vmatprep.subr.mxu0 0.0
      %1118 = vmatpush1.msra.mxu0 0.0
      %1119 = vmatprep.subr.mxu0 0.0
      %1120 = vmatpush1.msra.mxu0 0.0
      %1121 = vmatprep.subr.mxu0 0.0
      %1122 = vmatpush1.msra.mxu0 0.0
      %1123 = vmatprep.subr.mxu0 0.0
      %1124 = vmatpush1.msra.mxu0 0.0
      %1125 = vmatprep.subr.mxu0 0.0
      %1126 = vmatpush1.msra.mxu0 0.0
      %1127 = vmatprep.subr.mxu0 0.0
      %1128 = vmatpush1.msra.mxu0 0.0
      %1129 = vmatprep.subr.mxu0 0.0
      %1130 = vmatpush1.msra.mxu0 0.0
      %1131 = vmatprep.subr.mxu0 0.0
      %1132 = vmatpush1.msra.mxu0 0.0
      %1133 = vmatprep.subr.mxu0 0.0
      %1134 = vmatpush1.msra.mxu0 0.0
      %1135 = vmatprep.subr.mxu0 0.0
      %1136 = vmatpush1.msra.mxu0 0.0
      %1137 = vmatprep.subr.mxu0 0.0
      %1138 = vmatpush1.msra.mxu0 0.0
      %1139 = vmatprep.subr.mxu0 0.0
      %1140 = vmatpush1.msra.mxu0 0.0
      %1141 = vmatprep.subr.mxu0 0.0
      %1142 = vmatpush1.msra.mxu0 0.0
      %1143 = vmatprep.subr.mxu0 0.0
      %1144 = vmatpush1.msra.mxu0 0.0
      %1145 = vmatprep.mubr.f32.mxu0 0.0
      %1146 = vmatmul.mubr.f32.gmra.mrb[0].mxu0 %v1076
      %v1147 = vpop.f32.mrb[0].mxu0
      %v1148 = vadd.f32 0.0, %v1147
      %v1149 = vpop.f32.mrb[0].mxu0
      %1150 = vmatprep.mubr.f32.mxu0 0.0
      %1151 = vmatmul.mubr.f32.gmra.mrb[0].mxu0 %v1079
      %v1152 = vpop.f32.mrb[0].mxu0
      %v1153 = vadd.f32 0.0, %v1152
      %v1154 = vpop.f32.mrb[0].mxu0
      %1155 = vdwg.mxu0
      %vm1156 = vcmask 130048
      %v1157 = vsel %vm1156, %v1148, -inf
      %v1158 = vsel %vm1156, %v1153, -inf
      %v1159 = vmax.f32 %v1157, %v1158
      %v1160 = vrot.slane %v1159, 4
      %v1161 = vmax.f32 %v1159, %v1160
      %v1162 = vrot.slane %v1161, 2
      %v1163 = vmax.f32 %v1161, %v1162
      %v1164 = vrot.slane %v1163, 1
      %v1165 = vmax.f32 %v1163, %v1164
      %v1166 = vsub.f32 %v1148, %v1165
      %v1167 = vsub.f32 %v1153, %v1165
      %v1168 = vmul.f32 %v1166, 1.442695
      %v1169 = vpow.pop %v1168
      %v1170 = vmul.f32 %v1167, 1.442695
      %v1171 = vpow.pop %v1170
      %v1172 = vsel %vm1156, %v1169, 0.0
      %v1173 = vsel %vm1156, %v1171, 0.0
      %v1174 = vadd.f32 %v1172, %v1173
      %v1175 = vrot.slane %v1174, 4
      %v1176 = vadd.f32 %v1174, %v1175
      %v1177 = vrot.slane %v1176, 2
      %v1178 = vadd.f32 %v1176, %v1177
      %v1179 = vrot.slane %v1178, 1
      %v1180 = vadd.f32 %v1178, %v1179
      %v1181 = vrcp.pop %v1180
      %v1182 = vmul.f32 %v1169, %v1181
      %v1183 = vmul.f32 %v1171, %v1181
      %v1185 = vsel %vm1156, %v1005, 0
      %v1188 = vsel %vm1156, %v1010, 0
      %v1191 = vsel %vm1156, %v1015, 0
      %v1194 = vsel %vm1156, %v1020, 0
      %v1197 = vsel %vm1156, %v1025, 0
      %v1200 = vsel %vm1156, %v1030, 0
      %v1203 = vsel %vm1156, %v1035, 0
      %v1206 = vsel %vm1156, %v1040, 0
      %1208 = vmatprep.subr.mxu0 0.0
      %1209 = vmatpush1.msra.mxu0 %v1182
      %1210 = vmatprep.subr.mxu0 0.0
      %1211 = vmatpush1.msra.mxu0 %v1183
      %1212 = vmatprep.subr.mxu0 0.0
      %1213 = vmatpush1.msra.mxu0 0.0
      %1214 = vmatprep.subr.mxu0 0.0
      %1215 = vmatpush1.msra.mxu0 0.0
      %1216 = vmatprep.subr.mxu0 0.0
      %1217 = vmatpush1.msra.mxu0 0.0
      %1218 = vmatprep.subr.mxu0 0.0
      %1219 = vmatpush1.msra.mxu0 0.0
      %1220 = vmatprep.subr.mxu0 0.0
      %1221 = vmatpush1.msra.mxu0 0.0
      %1222 = vmatprep.subr.mxu0 0.0
      %1223 = vmatpush1.msra.mxu0 0.0
      %1224 = vmatprep.subr.mxu0 0.0
      %1225 = vmatpush1.msra.mxu0 0.0
      %1226 = vmatprep.subr.mxu0 0.0
      %1227 = vmatpush1.msra.mxu0 0.0
      %1228 = vmatprep.subr.mxu0 0.0
      %1229 = vmatpush1.msra.mxu0 0.0
      %1230 = vmatprep.subr.mxu0 0.0
      %1231 = vmatpush1.msra.mxu0 0.0
      %1232 = vmatprep.subr.mxu0 0.0
      %1233 = vmatpush1.msra.mxu0 0.0
      %1234 = vmatprep.subr.mxu0 0.0
      %1235 = vmatpush1.msra.mxu0 0.0
      %1236 = vmatprep.subr.mxu0 0.0
      %1237 = vmatpush1.msra.mxu0 0.0
      %1238 = vmatprep.subr.mxu0 0.0
      %1239 = vmatpush1.msra.mxu0 0.0
      %1240 = vmatprep.subr.mxu0 0.0
      %1241 = vmatpush1.msra.mxu0 0.0
      %1242 = vmatprep.subr.mxu0 0.0
      %1243 = vmatpush1.msra.mxu0 0.0
      %1244 = vmatprep.subr.mxu0 0.0
      %1245 = vmatpush1.msra.mxu0 0.0
      %1246 = vmatprep.subr.mxu0 0.0
      %1247 = vmatpush1.msra.mxu0 0.0
      %1248 = vmatprep.subr.mxu0 0.0
      %1249 = vmatpush1.msra.mxu0 0.0
      %1250 = vmatprep.subr.mxu0 0.0
      %1251 = vmatpush1.msra.mxu0 0.0
      %1252 = vmatprep.subr.mxu0 0.0
      %1253 = vmatpush1.msra.mxu0 0.0
      %1254 = vmatprep.subr.mxu0 0.0
      %1255 = vmatpush1.msra.mxu0 0.0
      %1256 = vmatprep.subr.mxu0 0.0
      %1257 = vmatpush1.msra.mxu0 0.0
      %1258 = vmatprep.subr.mxu0 0.0
      %1259 = vmatpush1.msra.mxu0 0.0
      %1260 = vmatprep.subr.mxu0 0.0
      %1261 = vmatpush1.msra.mxu0 0.0
      %1262 = vmatprep.subr.mxu0 0.0
      %1263 = vmatpush1.msra.mxu0 0.0
      %1264 = vmatprep.subr.mxu0 0.0
      %1265 = vmatpush1.msra.mxu0 0.0
      %1266 = vmatprep.subr.mxu0 0.0
      %1267 = vmatpush1.msra.mxu0 0.0
      %1268 = vmatprep.subr.mxu0 0.0
      %1269 = vmatpush1.msra.mxu0 0.0
      %1270 = vmatprep.subr.mxu0 0.0
      %1271 = vmatpush1.msra.mxu0 0.0
      %1272 = vmatprep.mubr.f32.mxu0 0.0
      %1273 = vmatmul.mubr.f32.gmra.mrb[0].mxu0 %v1185
      %v1274 = vpop.f32.mrb[0].mxu0
      %v1275 = vadd.f32 0.0, %v1274
      %v1276 = vpop.f32.mrb[0].mxu0
      %1277 = vmatprep.mubr.f32.mxu0 0.0
      %1278 = vmatmul.mubr.f32.gmra.mrb[0].mxu0 %v1188
      %v1279 = vpop.f32.mrb[0].mxu0
      %v1280 = vadd.f32 0.0, %v1279
      %v1281 = vpop.f32.mrb[0].mxu0
      %1282 = vmatprep.mubr.f32.mxu0 0.0
      %1283 = vmatmul.mubr.f32.gmra.mrb[0].mxu0 %v1191
      %v1284 = vpop.f32.mrb[0].mxu0
      %v1285 = vadd.f32 0.0, %v1284
      %v1286 = vpop.f32.mrb[0].mxu0
      %1287 = vmatprep.mubr.f32.mxu0 0.0
      %1288 = vmatmul.mubr.f32.gmra.mrb[0].mxu0 %v1194
      %v1289 = vpop.f32.mrb[0].mxu0
      %v1290 = vadd.f32 0.0, %v1289
      %v1291 = vpop.f32.mrb[0].mxu0
      %1292 = vmatprep.mubr.f32.mxu0 0.0
      %1293 = vmatmul.mubr.f32.gmra.mrb[0].mxu0 %v1197
      %v1294 = vpop.f32.mrb[0].mxu0
      %v1295 = vadd.f32 0.0, %v1294
      %v1296 = vpop.f32.mrb[0].mxu0
      %1297 = vmatprep.mubr.f32.mxu0 0.0
      %1298 = vmatmul.mubr.f32.gmra.mrb[0].mxu0 %v1200
      %v1299 = vpop.f32.mrb[0].mxu0
      %v1300 = vadd.f32 0.0, %v1299
      %v1301 = vpop.f32.mrb[0].mxu0
      %1302 = vmatprep.mubr.f32.mxu0 0.0
      %1303 = vmatmul.mubr.f32.gmra.mrb[0].mxu0 %v1203
      %v1304 = vpop.f32.mrb[0].mxu0
      %v1305 = vadd.f32 0.0, %v1304
      %v1306 = vpop.f32.mrb[0].mxu0
      %1307 = vmatprep.mubr.f32.mxu0 0.0
      %1308 = vmatmul.mubr.f32.gmra.mrb[0].mxu0 %v1206
      %v1309 = vpop.f32.mrb[0].mxu0
      %v1310 = vadd.f32 0.0, %v1309
      %v1311 = vpop.f32.mrb[0].mxu0
      %1312 = vdwg.mxu0
      %v1313 = vadd.f32 %v279, %v1275
      %v1314 = vadd.f32 %v280, %v1280
      %v1315 = vadd.f32 %v281, %v1285
      %v1316 = vadd.f32 %v282, %v1290
      %v1317 = vadd.f32 %v283, %v1295
      %v1318 = vadd.f32 %v284, %v1300
      %v1319 = vadd.f32 %v285, %v1305
      %v1320 = vadd.f32 %v286, %v1310
      %s1321 = scalar_lea.vmem %s1, 128
      %v1322 = vld [vmem:[%s1321] sm:$0xff]
      %v1323 = vld [vmem:[%s1321 + $0x8] sm:$0xff]
      %v1324 = vld [vmem:[%s1321 + $0x10] sm:$0xff]
      %v1325 = vld [vmem:[%s1321 + $0x18] sm:$0xff]
      %v1326 = vld [vmem:[%s1321 + $0x20] sm:$0xff]
      %v1327 = vld [vmem:[%s1321 + $0x28] sm:$0xff]
      %v1328 = vld [vmem:[%s1321 + $0x30] sm:$0xff]
      %v1329 = vld [vmem:[%s1321 + $0x38] sm:$0xff]
      %v1330 = vld [vmem:[%s1321 + $0x40] sm:$0xff]
      %v1331 = vld [vmem:[%s1321 + $0x48] sm:$0xff]
      %v1332 = vld [vmem:[%s1321 + $0x50] sm:$0xff]
      %v1333 = vld [vmem:[%s1321 + $0x58] sm:$0xff]
      %v1334 = vld [vmem:[%s1321 + $0x60] sm:$0xff]
      %v1335 = vld [vmem:[%s1321 + $0x68] sm:$0xff]
      %v1336 = vld [vmem:[%s1321 + $0x70] sm:$0xff]
      %v1337 = vld [vmem:[%s1321 + $0x78] sm:$0xff]
      %s1338 = scalar_lea.vmem %s2, 128
      %v1339 = vld [vmem:[%s1338] sm:$0xff]
      %v1340 = vld [vmem:[%s1338 + $0x8] sm:$0xff]
      %v1341 = vld [vmem:[%s1338 + $0x10] sm:$0xff]
      %v1342 = vld [vmem:[%s1338 + $0x18] sm:$0xff]
      %v1343 = vld [vmem:[%s1338 + $0x20] sm:$0xff]
      %v1344 = vld [vmem:[%s1338 + $0x28] sm:$0xff]
      %v1345 = vld [vmem:[%s1338 + $0x30] sm:$0xff]
      %v1346 = vld [vmem:[%s1338 + $0x38] sm:$0xff]
      %v1347 = vld [vmem:[%s1338 + $0x40] sm:$0xff]
      %v1348 = vld [vmem:[%s1338 + $0x48] sm:$0xff]
      %v1349 = vld [vmem:[%s1338 + $0x50] sm:$0xff]
      %v1350 = vld [vmem:[%s1338 + $0x58] sm:$0xff]
      %v1351 = vld [vmem:[%s1338 + $0x60] sm:$0xff]
      %v1352 = vld [vmem:[%s1338 + $0x68] sm:$0xff]
      %v1353 = vld [vmem:[%s1338 + $0x70] sm:$0xff]
      %v1354 = vld [vmem:[%s1338 + $0x78] sm:$0xff]
      %1356 = vset.pattern.permute.xlu0 0
      %1357 = vperm.xlu0 %1356, %v1339
      %v1358 = vpop.permute.xlu0 %1357
      %1361 = vset.pattern.permute.xlu0 0
      %1362 = vperm.xlu0 %1361, %v1340
      %v1363 = vpop.permute.xlu0 %1362
      %1366 = vset.pattern.permute.xlu0 0
      %1367 = vperm.xlu0 %1366, %v1341
      %v1368 = vpop.permute.xlu0 %1367
      %1371 = vset.pattern.permute.xlu0 0
      %1372 = vperm.xlu0 %1371, %v1342
      %v1373 = vpop.permute.xlu0 %1372
      %1376 = vset.pattern.permute.xlu0 0
      %1377 = vperm.xlu0 %1376, %v1343
      %v1378 = vpop.permute.xlu0 %1377
      %1381 = vset.pattern.permute.xlu0 0
      %1382 = vperm.xlu0 %1381, %v1344
      %v1383 = vpop.permute.xlu0 %1382
      %1386 = vset.pattern.permute.xlu0 0
      %1387 = vperm.xlu0 %1386, %v1345
      %v1388 = vpop.permute.xlu0 %1387
      %1391 = vset.pattern.permute.xlu0 0
      %1392 = vperm.xlu0 %1391, %v1346
      %v1393 = vpop.permute.xlu0 %1392
      %1396 = vset.pattern.permute.xlu0 0
      %1397 = vperm.xlu0 %1396, %v1347
      %v1398 = vpop.permute.xlu0 %1397
      %1401 = vset.pattern.permute.xlu0 0
      %1402 = vperm.xlu0 %1401, %v1348
      %v1403 = vpop.permute.xlu0 %1402
      %1406 = vset.pattern.permute.xlu0 0
      %1407 = vperm.xlu0 %1406, %v1349
      %v1408 = vpop.permute.xlu0 %1407
      %1411 = vset.pattern.permute.xlu0 0
      %1412 = vperm.xlu0 %1411, %v1350
      %v1413 = vpop.permute.xlu0 %1412
      %1416 = vset.pattern.permute.xlu0 0
      %1417 = vperm.xlu0 %1416, %v1351
      %v1418 = vpop.permute.xlu0 %1417
      %1421 = vset.pattern.permute.xlu0 0
      %1422 = vperm.xlu0 %1421, %v1352
      %v1423 = vpop.permute.xlu0 %1422
      %1426 = vset.pattern.permute.xlu0 0
      %1427 = vperm.xlu0 %1426, %v1353
      %v1428 = vpop.permute.xlu0 %1427
      %1431 = vset.pattern.permute.xlu0 0
      %1432 = vperm.xlu0 %1431, %v1354
      %v1433 = vpop.permute.xlu0 %1432
      %v1436 = vsel %vm399, %v1322, 0
      %v1439 = vsel %vm399, %v1323, 0
      %v1442 = vsel %vm399, %v1324, 0
      %v1445 = vsel %vm399, %v1325, 0
      %v1448 = vsel %vm399, %v1326, 0
      %v1451 = vsel %vm399, %v1327, 0
      %v1454 = vsel %vm399, %v1328, 0
      %v1457 = vsel %vm399, %v1329, 0
      %v1460 = vsel %vm399, %v1330, 0
      %v1463 = vsel %vm399, %v1331, 0
      %v1466 = vsel %vm399, %v1332, 0
      %v1469 = vsel %vm399, %v1333, 0
      %v1472 = vsel %vm399, %v1334, 0
      %v1475 = vsel %vm399, %v1335, 0
      %v1478 = vsel %vm399, %v1336, 0
      %v1481 = vsel %vm399, %v1337, 0
      %1483 = vmatprep.subr.mxu0 0.0
      %1484 = vmatpush1.msra.mxu0 %v1313
      %1485 = vmatprep.subr.mxu0 0.0
      %1486 = vmatpush1.msra.mxu0 %v1314
      %1487 = vmatprep.subr.mxu0 0.0
      %1488 = vmatpush1.msra.mxu0 %v1315
      %1489 = vmatprep.subr.mxu0 0.0
      %1490 = vmatpush1.msra.mxu0 %v1316
      %1491 = vmatprep.subr.mxu0 0.0
      %1492 = vmatpush1.msra.mxu0 %v1317
      %1493 = vmatprep.subr.mxu0 0.0
      %1494 = vmatpush1.msra.mxu0 %v1318
      %1495 = vmatprep.subr.mxu0 0.0
      %1496 = vmatpush1.msra.mxu0 %v1319
      %1497 = vmatprep.subr.mxu0 0.0
      %1498 = vmatpush1.msra.mxu0 %v1320
      %1499 = vmatprep.subr.mxu0 0.0
      %1500 = vmatpush1.msra.mxu0 0.0
      %1501 = vmatprep.subr.mxu0 0.0
      %1502 = vmatpush1.msra.mxu0 0.0
      %1503 = vmatprep.subr.mxu0 0.0
      %1504 = vmatpush1.msra.mxu0 0.0
      %1505 = vmatprep.subr.mxu0 0.0
      %1506 = vmatpush1.msra.mxu0 0.0
      %1507 = vmatprep.subr.mxu0 0.0
      %1508 = vmatpush1.msra.mxu0 0.0
      %1509 = vmatprep.subr.mxu0 0.0
      %1510 = vmatpush1.msra.mxu0 0.0
      %1511 = vmatprep.subr.mxu0 0.0
      %1512 = vmatpush1.msra.mxu0 0.0
      %1513 = vmatprep.subr.mxu0 0.0
      %1514 = vmatpush1.msra.mxu0 0.0
      %1515 = vmatprep.subr.mxu0 0.0
      %1516 = vmatpush1.msra.mxu0 0.0
      %1517 = vmatprep.subr.mxu0 0.0
      %1518 = vmatpush1.msra.mxu0 0.0
      %1519 = vmatprep.subr.mxu0 0.0
      %1520 = vmatpush1.msra.mxu0 0.0
      %1521 = vmatprep.subr.mxu0 0.0
      %1522 = vmatpush1.msra.mxu0 0.0
      %1523 = vmatprep.subr.mxu0 0.0
      %1524 = vmatpush1.msra.mxu0 0.0
      %1525 = vmatprep.subr.mxu0 0.0
      %1526 = vmatpush1.msra.mxu0 0.0
      %1527 = vmatprep.subr.mxu0 0.0
      %1528 = vmatpush1.msra.mxu0 0.0
      %1529 = vmatprep.subr.mxu0 0.0
      %1530 = vmatpush1.msra.mxu0 0.0
      %1531 = vmatprep.subr.mxu0 0.0
      %1532 = vmatpush1.msra.mxu0 0.0
      %1533 = vmatprep.subr.mxu0 0.0
      %1534 = vmatpush1.msra.mxu0 0.0
      %1535 = vmatprep.subr.mxu0 0.0
      %1536 = vmatpush1.msra.mxu0 0.0
      %1537 = vmatprep.subr.mxu0 0.0
      %1538 = vmatpush1.msra.mxu0 0.0
      %1539 = vmatprep.subr.mxu0 0.0
      %1540 = vmatpush1.msra.mxu0 0.0
      %1541 = vmatprep.subr.mxu0 0.0
      %1542 = vmatpush1.msra.mxu0 0.0
      %1543 = vmatprep.subr.mxu0 0.0
      %1544 = vmatpush1.msra.mxu0 0.0
      %1545 = vmatprep.subr.mxu0 0.0
      %1546 = vmatpush1.msra.mxu0 0.0
      %1547 = vmatprep.mubr.f32.mxu0 0.0
      %1548 = vmatmul.mubr.f32.gmra.mrb[0].mxu0 %v1436
      %v1549 = vpop.f32.mrb[0].mxu0
      %v1550 = vadd.f32 %v1358, %v1549
      %v1551 = vpop.f32.mrb[0].mxu0
      %1552 = vmatprep.mubr.f32.mxu0 0.0
      %1553 = vmatmul.mubr.f32.gmra.mrb[0].mxu0 %v1439
      %v1554 = vpop.f32.mrb[0].mxu0
      %v1555 = vadd.f32 %v1363, %v1554
      %v1556 = vpop.f32.mrb[0].mxu0
      %1557 = vmatprep.mubr.f32.mxu0 0.0
      %1558 = vmatmul.mubr.f32.gmra.mrb[0].mxu0 %v1442
      %v1559 = vpop.f32.mrb[0].mxu0
      %v1560 = vadd.f32 %v1368, %v1559
      %v1561 = vpop.f32.mrb[0].mxu0
      %1562 = vmatprep.mubr.f32.mxu0 0.0
      %1563 = vmatmul.mubr.f32.gmra.mrb[0].mxu0 %v1445
      %v1564 = vpop.f32.mrb[0].mxu0
      %v1565 = vadd.f32 %v1373, %v1564
      %v1566 = vpop.f32.mrb[0].mxu0
      %1567 = vmatprep.mubr.f32.mxu0 0.0
      %1568 = vmatmul.mubr.f32.gmra.mrb[0].mxu0 %v1448
      %v1569 = vpop.f32.mrb[0].mxu0
      %v1570 = vadd.f32 %v1378, %v1569
      %v1571 = vpop.f32.mrb[0].mxu0
      %1572 = vmatprep.mubr.f32.mxu0 0.0
      %1573 = vmatmul.mubr.f32.gmra.mrb[0].mxu0 %v1451
      %v1574 = vpop.f32.mrb[0].mxu0
      %v1575 = vadd.f32 %v1383, %v1574
      %v1576 = vpop.f32.mrb[0].mxu0
      %1577 = vmatprep.mubr.f32.mxu0 0.0
      %1578 = vmatmul.mubr.f32.gmra.mrb[0].mxu0 %v1454
      %v1579 = vpop.f32.mrb[0].mxu0
      %v1580 = vadd.f32 %v1388, %v1579
      %v1581 = vpop.f32.mrb[0].mxu0
      %1582 = vmatprep.mubr.f32.mxu0 0.0
      %1583 = vmatmul.mubr.f32.gmra.mrb[0].mxu0 %v1457
      %v1584 = vpop.f32.mrb[0].mxu0
      %v1585 = vadd.f32 %v1393, %v1584
      %v1586 = vpop.f32.mrb[0].mxu0
      %1587 = vmatprep.mubr.f32.mxu0 0.0
      %1588 = vmatmul.mubr.f32.gmra.mrb[0].mxu0 %v1460
      %v1589 = vpop.f32.mrb[0].mxu0
      %v1590 = vadd.f32 %v1398, %v1589
      %v1591 = vpop.f32.mrb[0].mxu0
      %1592 = vmatprep.mubr.f32.mxu0 0.0
      %1593 = vmatmul.mubr.f32.gmra.mrb[0].mxu0 %v1463
      %v1594 = vpop.f32.mrb[0].mxu0
      %v1595 = vadd.f32 %v1403, %v1594
      %v1596 = vpop.f32.mrb[0].mxu0
      %1597 = vmatprep.mubr.f32.mxu0 0.0
      %1598 = vmatmul.mubr.f32.gmra.mrb[0].mxu0 %v1466
      %v1599 = vpop.f32.mrb[0].mxu0
      %v1600 = vadd.f32 %v1408, %v1599
      %v1601 = vpop.f32.mrb[0].mxu0
      %1602 = vmatprep.mubr.f32.mxu0 0.0
      %1603 = vmatmul.mubr.f32.gmra.mrb[0].mxu0 %v1469
      %v1604 = vpop.f32.mrb[0].mxu0
      %v1605 = vadd.f32 %v1413, %v1604
      %v1606 = vpop.f32.mrb[0].mxu0
      %1607 = vmatprep.mubr.f32.mxu0 0.0
      %1608 = vmatmul.mubr.f32.gmra.mrb[0].mxu0 %v1472
      %v1609 = vpop.f32.mrb[0].mxu0
      %v1610 = vadd.f32 %v1418, %v1609
      %v1611 = vpop.f32.mrb[0].mxu0
      %1612 = vmatprep.mubr.f32.mxu0 0.0
      %1613 = vmatmul.mubr.f32.gmra.mrb[0].mxu0 %v1475
      %v1614 = vpop.f32.mrb[0].mxu0
      %v1615 = vadd.f32 %v1423, %v1614
      %v1616 = vpop.f32.mrb[0].mxu0
      %1617 = vmatprep.mubr.f32.mxu0 0.0
      %1618 = vmatmul.mubr.f32.gmra.mrb[0].mxu0 %v1478
      %v1619 = vpop.f32.mrb[0].mxu0
      %v1620 = vadd.f32 %v1428, %v1619
      %v1621 = vpop.f32.mrb[0].mxu0
      %1622 = vmatprep.mubr.f32.mxu0 0.0
      %1623 = vmatmul.mubr.f32.gmra.mrb[0].mxu0 %v1481
      %v1624 = vpop.f32.mrb[0].mxu0
      %v1625 = vadd.f32 %v1433, %v1624
      %v1626 = vpop.f32.mrb[0].mxu0
      %1627 = vdwg.mxu0
      %v1628 = vmax.f32 %v1550, 0.0
      %v1629 = vmax.f32 %v1555, 0.0
      %v1630 = vmax.f32 %v1560, 0.0
      %v1631 = vmax.f32 %v1565, 0.0
      %v1632 = vmax.f32 %v1570, 0.0
      %v1633 = vmax.f32 %v1575, 0.0
      %v1634 = vmax.f32 %v1580, 0.0
      %v1635 = vmax.f32 %v1585, 0.0
      %v1636 = vmax.f32 %v1590, 0.0
      %v1637 = vmax.f32 %v1595, 0.0
      %v1638 = vmax.f32 %v1600, 0.0
      %v1639 = vmax.f32 %v1605, 0.0
      %v1640 = vmax.f32 %v1610, 0.0
      %v1641 = vmax.f32 %v1615, 0.0
      %v1642 = vmax.f32 %v1620, 0.0
      %v1643 = vmax.f32 %v1625, 0.0
      %s1644 = scalar_lea.vmem %s3, 128
      %v1645 = vld [vmem:[%s1644] sm:$0xff]
      %v1646 = vld [vmem:[%s1644 + $0x8] sm:$0xff]
      %v1647 = vld [vmem:[%s1644 + $0x10] sm:$0xff]
      %v1648 = vld [vmem:[%s1644 + $0x18] sm:$0xff]
      %v1649 = vld [vmem:[%s1644 + $0x20] sm:$0xff]
      %v1650 = vld [vmem:[%s1644 + $0x28] sm:$0xff]
      %v1651 = vld [vmem:[%s1644 + $0x30] sm:$0xff]
      %v1652 = vld [vmem:[%s1644 + $0x38] sm:$0xff]
      %v1653 = vld [vmem:[%s1644 + $0x40] sm:$0xff]
      %v1654 = vld [vmem:[%s1644 + $0x48] sm:$0xff]
      %v1655 = vld [vmem:[%s1644 + $0x50] sm:$0xff]
      %v1656 = vld [vmem:[%s1644 + $0x58] sm:$0xff]
      %v1657 = vld [vmem:[%s1644 + $0x60] sm:$0xff]
      %v1658 = vld [vmem:[%s1644 + $0x68] sm:$0xff]
      %v1659 = vld [vmem:[%s1644 + $0x70] sm:$0xff]
      %v1660 = vld [vmem:[%s1644 + $0x78] sm:$0xff]
      %s1661 = scalar_lea.vmem %s4, 128
      %v1662 = vld [vmem:[%s1661] sm:$0xff]
      %v1663 = vld [vmem:[%s1661 + $0x8] sm:$0xff]
      %v1664 = vld [vmem:[%s1661 + $0x10] sm:$0xff]
      %v1665 = vld [vmem:[%s1661 + $0x18] sm:$0xff]
      %v1666 = vld [vmem:[%s1661 + $0x20] sm:$0xff]
      %v1667 = vld [vmem:[%s1661 + $0x28] sm:$0xff]
      %v1668 = vld [vmem:[%s1661 + $0x30] sm:$0xff]
      %v1669 = vld [vmem:[%s1661 + $0x38] sm:$0xff]
      %v1670 = vld [vmem:[%s1661 + $0x40] sm:$0xff]
      %v1671 = vld [vmem:[%s1661 + $0x48] sm:$0xff]
      %v1672 = vld [vmem:[%s1661 + $0x50] sm:$0xff]
      %v1673 = vld [vmem:[%s1661 + $0x58] sm:$0xff]
      %v1674 = vld [vmem:[%s1661 + $0x60] sm:$0xff]
      %v1675 = vld [vmem:[%s1661 + $0x68] sm:$0xff]
      %v1676 = vld [vmem:[%s1661 + $0x70] sm:$0xff]
      %v1677 = vld [vmem:[%s1661 + $0x78] sm:$0xff]
      %1679 = vset.pattern.permute.xlu0 0
      %1680 = vperm.xlu0 %1679, %v1662
      %v1681 = vpop.permute.xlu0 %1680
      %1684 = vset.pattern.permute.xlu0 0
      %1685 = vperm.xlu0 %1684, %v1663
      %v1686 = vpop.permute.xlu0 %1685
      %1689 = vset.pattern.permute.xlu0 0
      %1690 = vperm.xlu0 %1689, %v1664
      %v1691 = vpop.permute.xlu0 %1690
      %1694 = vset.pattern.permute.xlu0 0
      %1695 = vperm.xlu0 %1694, %v1665
      %v1696 = vpop.permute.xlu0 %1695
      %1699 = vset.pattern.permute.xlu0 0
      %1700 = vperm.xlu0 %1699, %v1666
      %v1701 = vpop.permute.xlu0 %1700
      %1704 = vset.pattern.permute.xlu0 0
      %1705 = vperm.xlu0 %1704, %v1667
      %v1706 = vpop.permute.xlu0 %1705
      %1709 = vset.pattern.permute.xlu0 0
      %1710 = vperm.xlu0 %1709, %v1668
      %v1711 = vpop.permute.xlu0 %1710
      %1714 = vset.pattern.permute.xlu0 0
      %1715 = vperm.xlu0 %1714, %v1669
      %v1716 = vpop.permute.xlu0 %1715
      %1719 = vset.pattern.permute.xlu0 0
      %1720 = vperm.xlu0 %1719, %v1670
      %v1721 = vpop.permute.xlu0 %1720
      %1724 = vset.pattern.permute.xlu0 0
      %1725 = vperm.xlu0 %1724, %v1671
      %v1726 = vpop.permute.xlu0 %1725
      %1729 = vset.pattern.permute.xlu0 0
      %1730 = vperm.xlu0 %1729, %v1672
      %v1731 = vpop.permute.xlu0 %1730
      %1734 = vset.pattern.permute.xlu0 0
      %1735 = vperm.xlu0 %1734, %v1673
      %v1736 = vpop.permute.xlu0 %1735
      %1739 = vset.pattern.permute.xlu0 0
      %1740 = vperm.xlu0 %1739, %v1674
      %v1741 = vpop.permute.xlu0 %1740
      %1744 = vset.pattern.permute.xlu0 0
      %1745 = vperm.xlu0 %1744, %v1675
      %v1746 = vpop.permute.xlu0 %1745
      %1749 = vset.pattern.permute.xlu0 0
      %1750 = vperm.xlu0 %1749, %v1676
      %v1751 = vpop.permute.xlu0 %1750
      %1754 = vset.pattern.permute.xlu0 0
      %1755 = vperm.xlu0 %1754, %v1677
      %v1756 = vpop.permute.xlu0 %1755
      %1758 = vmatprep.subr.mxu0 0.0
      %1759 = vmatpush1.msra.mxu0 %v1628
      %1760 = vmatprep.subr.mxu0 0.0
      %1761 = vmatpush1.msra.mxu0 %v1629
      %1762 = vmatprep.subr.mxu0 0.0
      %1763 = vmatpush1.msra.mxu0 %v1630
      %1764 = vmatprep.subr.mxu0 0.0
      %1765 = vmatpush1.msra.mxu0 %v1631
      %1766 = vmatprep.subr.mxu0 0.0
      %1767 = vmatpush1.msra.mxu0 %v1632
      %1768 = vmatprep.subr.mxu0 0.0
      %1769 = vmatpush1.msra.mxu0 %v1633
      %1770 = vmatprep.subr.mxu0 0.0
      %1771 = vmatpush1.msra.mxu0 %v1634
      %1772 = vmatprep.subr.mxu0 0.0
      %1773 = vmatpush1.msra.mxu0 %v1635
      %1774 = vmatprep.subr.mxu0 0.0
      %1775 = vmatpush1.msra.mxu0 %v1636
      %1776 = vmatprep.subr.mxu0 0.0
      %1777 = vmatpush1.msra.mxu0 %v1637
      %1778 = vmatprep.subr.mxu0 0.0
      %1779 = vmatpush1.msra.mxu0 %v1638
      %1780 = vmatprep.subr.mxu0 0.0
      %1781 = vmatpush1.msra.mxu0 %v1639
      %1782 = vmatprep.subr.mxu0 0.0
      %1783 = vmatpush1.msra.mxu0 %v1640
      %1784 = vmatprep.subr.mxu0 0.0
      %1785 = vmatpush1.msra.mxu0 %v1641
      %1786 = vmatprep.subr.mxu0 0.0
      %1787 = vmatpush1.msra.mxu0 %v1642
      %1788 = vmatprep.subr.mxu0 0.0
      %1789 = vmatpush1.msra.mxu0 %v1643
      %1790 = vmatprep.subr.mxu0 0.0
      %1791 = vmatpush1.msra.mxu0 0.0
      %1792 = vmatprep.subr.mxu0 0.0
      %1793 = vmatpush1.msra.mxu0 0.0
      %1794 = vmatprep.subr.mxu0 0.0
      %1795 = vmatpush1.msra.mxu0 0.0
      %1796 = vmatprep.subr.mxu0 0.0
      %1797 = vmatpush1.msra.mxu0 0.0
      %1798 = vmatprep.subr.mxu0 0.0
      %1799 = vmatpush1.msra.mxu0 0.0
      %1800 = vmatprep.subr.mxu0 0.0
      %1801 = vmatpush1.msra.mxu0 0.0
      %1802 = vmatprep.subr.mxu0 0.0
      %1803 = vmatpush1.msra.mxu0 0.0
      %1804 = vmatprep.subr.mxu0 0.0
      %1805 = vmatpush1.msra.mxu0 0.0
      %1806 = vmatprep.subr.mxu0 0.0
      %1807 = vmatpush1.msra.mxu0 0.0
      %1808 = vmatprep.subr.mxu0 0.0
      %1809 = vmatpush1.msra.mxu0 0.0
      %1810 = vmatprep.subr.mxu0 0.0
      %1811 = vmatpush1.msra.mxu0 0.0
      %1812 = vmatprep.subr.mxu0 0.0
      %1813 = vmatpush1.msra.mxu0 0.0
      %1814 = vmatprep.subr.mxu0 0.0
      %1815 = vmatpush1.msra.mxu0 0.0
      %1816 = vmatprep.subr.mxu0 0.0
      %1817 = vmatpush1.msra.mxu0 0.0
      %1818 = vmatprep.subr.mxu0 0.0
      %1819 = vmatpush1.msra.mxu0 0.0
      %1820 = vmatprep.subr.mxu0 0.0
      %1821 = vmatpush1.msra.mxu0 0.0
      %1822 = vmatprep.mubr.f32.mxu0 0.0
      %1823 = vmatmul.mubr.f32.gmra.mrb[0].mxu0 %v1645
      %v1824 = vpop.f32.mrb[0].mxu0
      %v1825 = vadd.f32 %v1681, %v1824
      %v1826 = vpop.f32.mrb[0].mxu0
      %1827 = vmatprep.mubr.f32.mxu0 0.0
      %1828 = vmatmul.mubr.f32.gmra.mrb[0].mxu0 %v1646
      %v1829 = vpop.f32.mrb[0].mxu0
      %v1830 = vadd.f32 %v1686, %v1829
      %v1831 = vpop.f32.mrb[0].mxu0
      %1832 = vmatprep.mubr.f32.mxu0 0.0
      %1833 = vmatmul.mubr.f32.gmra.mrb[0].mxu0 %v1647
      %v1834 = vpop.f32.mrb[0].mxu0
      %v1835 = vadd.f32 %v1691, %v1834
      %v1836 = vpop.f32.mrb[0].mxu0
      %1837 = vmatprep.mubr.f32.mxu0 0.0
      %1838 = vmatmul.mubr.f32.gmra.mrb[0].mxu0 %v1648
      %v1839 = vpop.f32.mrb[0].mxu0
      %v1840 = vadd.f32 %v1696, %v1839
      %v1841 = vpop.f32.mrb[0].mxu0
      %1842 = vmatprep.mubr.f32.mxu0 0.0
      %1843 = vmatmul.mubr.f32.gmra.mrb[0].mxu0 %v1649
      %v1844 = vpop.f32.mrb[0].mxu0
      %v1845 = vadd.f32 %v1701, %v1844
      %v1846 = vpop.f32.mrb[0].mxu0
      %1847 = vmatprep.mubr.f32.mxu0 0.0
      %1848 = vmatmul.mubr.f32.gmra.mrb[0].mxu0 %v1650
      %v1849 = vpop.f32.mrb[0].mxu0
      %v1850 = vadd.f32 %v1706, %v1849
      %v1851 = vpop.f32.mrb[0].mxu0
      %1852 = vmatprep.mubr.f32.mxu0 0.0
      %1853 = vmatmul.mubr.f32.gmra.mrb[0].mxu0 %v1651
      %v1854 = vpop.f32.mrb[0].mxu0
      %v1855 = vadd.f32 %v1711, %v1854
      %v1856 = vpop.f32.mrb[0].mxu0
      %1857 = vmatprep.mubr.f32.mxu0 0.0
      %1858 = vmatmul.mubr.f32.gmra.mrb[0].mxu0 %v1652
      %v1859 = vpop.f32.mrb[0].mxu0
      %v1860 = vadd.f32 %v1716, %v1859
      %v1861 = vpop.f32.mrb[0].mxu0
      %1862 = vmatprep.mubr.f32.mxu0 0.0
      %1863 = vmatmul.mubr.f32.gmra.mrb[0].mxu0 %v1653
      %v1864 = vpop.f32.mrb[0].mxu0
      %v1865 = vadd.f32 %v1721, %v1864
      %v1866 = vpop.f32.mrb[0].mxu0
      %1867 = vmatprep.mubr.f32.mxu0 0.0
      %1868 = vmatmul.mubr.f32.gmra.mrb[0].mxu0 %v1654
      %v1869 = vpop.f32.mrb[0].mxu0
      %v1870 = vadd.f32 %v1726, %v1869
      %v1871 = vpop.f32.mrb[0].mxu0
      %1872 = vmatprep.mubr.f32.mxu0 0.0
      %1873 = vmatmul.mubr.f32.gmra.mrb[0].mxu0 %v1655
      %v1874 = vpop.f32.mrb[0].mxu0
      %v1875 = vadd.f32 %v1731, %v1874
      %v1876 = vpop.f32.mrb[0].mxu0
      %1877 = vmatprep.mubr.f32.mxu0 0.0
      %1878 = vmatmul.mubr.f32.gmra.mrb[0].mxu0 %v1656
      %v1879 = vpop.f32.mrb[0].mxu0
      %v1880 = vadd.f32 %v1736, %v1879
      %v1881 = vpop.f32.mrb[0].mxu0
      %1882 = vmatprep.mubr.f32.mxu0 0.0
      %1883 = vmatmul.mubr.f32.gmra.mrb[0].mxu0 %v1657
      %v1884 = vpop.f32.mrb[0].mxu0
      %v1885 = vadd.f32 %v1741, %v1884
      %v1886 = vpop.f32.mrb[0].mxu0
      %1887 = vmatprep.mubr.f32.mxu0 0.0
      %1888 = vmatmul.mubr.f32.gmra.mrb[0].mxu0 %v1658
      %v1889 = vpop.f32.mrb[0].mxu0
      %v1890 = vadd.f32 %v1746, %v1889
      %v1891 = vpop.f32.mrb[0].mxu0
      %1892 = vmatprep.mubr.f32.mxu0 0.0
      %1893 = vmatmul.mubr.f32.gmra.mrb[0].mxu0 %v1659
      %v1894 = vpop.f32.mrb[0].mxu0
      %v1895 = vadd.f32 %v1751, %v1894
      %v1896 = vpop.f32.mrb[0].mxu0
      %1897 = vmatprep.mubr.f32.mxu0 0.0
      %1898 = vmatmul.mubr.f32.gmra.mrb[0].mxu0 %v1660
      %v1899 = vpop.f32.mrb[0].mxu0
      %v1900 = vadd.f32 %v1756, %v1899
      %v1901 = vpop.f32.mrb[0].mxu0
      %1902 = vdwg.mxu0
      %v1903 = vmax.f32 %v1825, 0.0
      %v1904 = vmax.f32 %v1830, 0.0
      %v1905 = vmax.f32 %v1835, 0.0
      %v1906 = vmax.f32 %v1840, 0.0
      %v1907 = vmax.f32 %v1845, 0.0
      %v1908 = vmax.f32 %v1850, 0.0
      %v1909 = vmax.f32 %v1855, 0.0
      %v1910 = vmax.f32 %v1860, 0.0
      %v1911 = vmax.f32 %v1865, 0.0
      %v1912 = vmax.f32 %v1870, 0.0
      %v1913 = vmax.f32 %v1875, 0.0
      %v1914 = vmax.f32 %v1880, 0.0
      %v1915 = vmax.f32 %v1885, 0.0
      %v1916 = vmax.f32 %v1890, 0.0
      %v1917 = vmax.f32 %v1895, 0.0
      %v1918 = vmax.f32 %v1900, 0.0
      %s1919 = scalar_lea.vmem %s5, 64
      %v1920 = vld [vmem:[%s1919] sm:$0xff]
      %v1921 = vld [vmem:[%s1919 + $0x8] sm:$0xff]
      %v1922 = vld [vmem:[%s1919 + $0x10] sm:$0xff]
      %v1923 = vld [vmem:[%s1919 + $0x18] sm:$0xff]
      %v1924 = vld [vmem:[%s1919 + $0x20] sm:$0xff]
      %v1925 = vld [vmem:[%s1919 + $0x28] sm:$0xff]
      %v1926 = vld [vmem:[%s1919 + $0x30] sm:$0xff]
      %v1927 = vld [vmem:[%s1919 + $0x38] sm:$0xff]
      %s1928 = scalar_lea.vmem %s6, 64
      %v1929 = vld [vmem:[%s1928] sm:$0xff]
      %v1930 = vld [vmem:[%s1928 + $0x8] sm:$0xff]
      %v1931 = vld [vmem:[%s1928 + $0x10] sm:$0xff]
      %v1932 = vld [vmem:[%s1928 + $0x18] sm:$0xff]
      %v1933 = vld [vmem:[%s1928 + $0x20] sm:$0xff]
      %v1934 = vld [vmem:[%s1928 + $0x28] sm:$0xff]
      %v1935 = vld [vmem:[%s1928 + $0x30] sm:$0xff]
      %v1936 = vld [vmem:[%s1928 + $0x38] sm:$0xff]
      %1938 = vset.pattern.permute.xlu0 0
      %1939 = vperm.xlu0 %1938, %v1929
      %v1940 = vpop.permute.xlu0 %1939
      %1943 = vset.pattern.permute.xlu0 0
      %1944 = vperm.xlu0 %1943, %v1930
      %v1945 = vpop.permute.xlu0 %1944
      %1948 = vset.pattern.permute.xlu0 0
      %1949 = vperm.xlu0 %1948, %v1931
      %v1950 = vpop.permute.xlu0 %1949
      %1953 = vset.pattern.permute.xlu0 0
      %1954 = vperm.xlu0 %1953, %v1932
      %v1955 = vpop.permute.xlu0 %1954
      %1958 = vset.pattern.permute.xlu0 0
      %1959 = vperm.xlu0 %1958, %v1933
      %v1960 = vpop.permute.xlu0 %1959
      %1963 = vset.pattern.permute.xlu0 0
      %1964 = vperm.xlu0 %1963, %v1934
      %v1965 = vpop.permute.xlu0 %1964
      %1968 = vset.pattern.permute.xlu0 0
      %1969 = vperm.xlu0 %1968, %v1935
      %v1970 = vpop.permute.xlu0 %1969
      %1973 = vset.pattern.permute.xlu0 0
      %1974 = vperm.xlu0 %1973, %v1936
      %v1975 = vpop.permute.xlu0 %1974
      %1977 = vmatprep.subr.mxu0 0.0
      %1978 = vmatpush1.msra.mxu0 %v1903
      %1979 = vmatprep.subr.mxu0 0.0
      %1980 = vmatpush1.msra.mxu0 %v1904
      %1981 = vmatprep.subr.mxu0 0.0
      %1982 = vmatpush1.msra.mxu0 %v1905
      %1983 = vmatprep.subr.mxu0 0.0
      %1984 = vmatpush1.msra.mxu0 %v1906
      %1985 = vmatprep.subr.mxu0 0.0
      %1986 = vmatpush1.msra.mxu0 %v1907
      %1987 = vmatprep.subr.mxu0 0.0
      %1988 = vmatpush1.msra.mxu0 %v1908
      %1989 = vmatprep.subr.mxu0 0.0
      %1990 = vmatpush1.msra.mxu0 %v1909
      %1991 = vmatprep.subr.mxu0 0.0
      %1992 = vmatpush1.msra.mxu0 %v1910
      %1993 = vmatprep.subr.mxu0 0.0
      %1994 = vmatpush1.msra.mxu0 %v1911
      %1995 = vmatprep.subr.mxu0 0.0
      %1996 = vmatpush1.msra.mxu0 %v1912
      %1997 = vmatprep.subr.mxu0 0.0
      %1998 = vmatpush1.msra.mxu0 %v1913
      %1999 = vmatprep.subr.mxu0 0.0
      %2000 = vmatpush1.msra.mxu0 %v1914
      %2001 = vmatprep.subr.mxu0 0.0
      %2002 = vmatpush1.msra.mxu0 %v1915
      %2003 = vmatprep.subr.mxu0 0.0
      %2004 = vmatpush1.msra.mxu0 %v1916
      %2005 = vmatprep.subr.mxu0 0.0
      %2006 = vmatpush1.msra.mxu0 %v1917
      %2007 = vmatprep.subr.mxu0 0.0
      %2008 = vmatpush1.msra.mxu0 %v1918
      %2009 = vmatprep.subr.mxu0 0.0
      %2010 = vmatpush1.msra.mxu0 0.0
      %2011 = vmatprep.subr.mxu0 0.0
      %2012 = vmatpush1.msra.mxu0 0.0
      %2013 = vmatprep.subr.mxu0 0.0
      %2014 = vmatpush1.msra.mxu0 0.0
      %2015 = vmatprep.subr.mxu0 0.0
      %2016 = vmatpush1.msra.mxu0 0.0
      %2017 = vmatprep.subr.mxu0 0.0
      %2018 = vmatpush1.msra.mxu0 0.0
      %2019 = vmatprep.subr.mxu0 0.0
      %2020 = vmatpush1.msra.mxu0 0.0
      %2021 = vmatprep.subr.mxu0 0.0
      %2022 = vmatpush1.msra.mxu0 0.0
      %2023 = vmatprep.subr.mxu0 0.0
      %2024 = vmatpush1.msra.mxu0 0.0
      %2025 = vmatprep.subr.mxu0 0.0
      %2026 = vmatpush1.msra.mxu0 0.0
      %2027 = vmatprep.subr.mxu0 0.0
      %2028 = vmatpush1.msra.mxu0 0.0
      %2029 = vmatprep.subr.mxu0 0.0
      %2030 = vmatpush1.msra.mxu0 0.0
      %2031 = vmatprep.subr.mxu0 0.0
      %2032 = vmatpush1.msra.mxu0 0.0
      %2033 = vmatprep.subr.mxu0 0.0
      %2034 = vmatpush1.msra.mxu0 0.0
      %2035 = vmatprep.subr.mxu0 0.0
      %2036 = vmatpush1.msra.mxu0 0.0
      %2037 = vmatprep.subr.mxu0 0.0
      %2038 = vmatpush1.msra.mxu0 0.0
      %2039 = vmatprep.subr.mxu0 0.0
      %2040 = vmatpush1.msra.mxu0 0.0
      %2041 = vmatprep.mubr.f32.mxu0 0.0
      %2042 = vmatmul.mubr.f32.gmra.mrb[0].mxu0 %v1920
      %v2043 = vpop.f32.mrb[0].mxu0
      %v2044 = vadd.f32 %v1940, %v2043
      %v2045 = vpop.f32.mrb[0].mxu0
      %2046 = vmatprep.mubr.f32.mxu0 0.0
      %2047 = vmatmul.mubr.f32.gmra.mrb[0].mxu0 %v1921
      %v2048 = vpop.f32.mrb[0].mxu0
      %v2049 = vadd.f32 %v1945, %v2048
      %v2050 = vpop.f32.mrb[0].mxu0
      %2051 = vmatprep.mubr.f32.mxu0 0.0
      %2052 = vmatmul.mubr.f32.gmra.mrb[0].mxu0 %v1922
      %v2053 = vpop.f32.mrb[0].mxu0
      %v2054 = vadd.f32 %v1950, %v2053
      %v2055 = vpop.f32.mrb[0].mxu0
      %2056 = vmatprep.mubr.f32.mxu0 0.0
      %2057 = vmatmul.mubr.f32.gmra.mrb[0].mxu0 %v1923
      %v2058 = vpop.f32.mrb[0].mxu0
      %v2059 = vadd.f32 %v1955, %v2058
      %v2060 = vpop.f32.mrb[0].mxu0
      %2061 = vmatprep.mubr.f32.mxu0 0.0
      %2062 = vmatmul.mubr.f32.gmra.mrb[0].mxu0 %v1924
      %v2063 = vpop.f32.mrb[0].mxu0
      %v2064 = vadd.f32 %v1960, %v2063
      %v2065 = vpop.f32.mrb[0].mxu0
      %2066 = vmatprep.mubr.f32.mxu0 0.0
      %2067 = vmatmul.mubr.f32.gmra.mrb[0].mxu0 %v1925
      %v2068 = vpop.f32.mrb[0].mxu0
      %v2069 = vadd.f32 %v1965, %v2068
      %v2070 = vpop.f32.mrb[0].mxu0
      %2071 = vmatprep.mubr.f32.mxu0 0.0
      %2072 = vmatmul.mubr.f32.gmra.mrb[0].mxu0 %v1926
      %v2073 = vpop.f32.mrb[0].mxu0
      %v2074 = vadd.f32 %v1970, %v2073
      %v2075 = vpop.f32.mrb[0].mxu0
      %2076 = vmatprep.mubr.f32.mxu0 0.0
      %2077 = vmatmul.mubr.f32.gmra.mrb[0].mxu0 %v1927
      %v2078 = vpop.f32.mrb[0].mxu0
      %v2079 = vadd.f32 %v1975, %v2078
      %v2080 = vpop.f32.mrb[0].mxu0
      %2081 = vdwg.mxu0
      %2082 = vxpose.xlu0.b32.start [1/16] %v2044, 128
      %2083 = vxpose.xlu0.b32.cont [2/16] %v2049, 128
      %2084 = vxpose.xlu0.b32.cont [3/16] %v2054, 128
      %2085 = vxpose.xlu0.b32.cont [4/16] %v2059, 128
      %2086 = vxpose.xlu0.b32.cont [5/16] %v2064, 128
      %2087 = vxpose.xlu0.b32.cont [6/16] %v2069, 128
      %2088 = vxpose.xlu0.b32.cont [7/16] %v2074, 128
      %2089 = vxpose.xlu0.b32.cont [8/16] %v2079, 128
      %2090 = vxpose.xlu0.b32.cont [9/16] 0.0, 128
      %2091 = vxpose.xlu0.b32.cont [10/16] 0.0, 128
      %2092 = vxpose.xlu0.b32.cont [11/16] 0.0, 128
      %2093 = vxpose.xlu0.b32.cont [12/16] 0.0, 128
      %2094 = vxpose.xlu0.b32.cont [13/16] 0.0, 128
      %2095 = vxpose.xlu0.b32.cont [14/16] 0.0, 128
      %2096 = vxpose.xlu0.b32.cont [15/16] 0.0, 128
      %2097 = vxpose.xlu0.b32.end [16/16] 0.0, 128
      %v2098 = vpop.trf.xlu0
      %v2099 = vpop.trf.xlu0
      %v2100 = vpop.trf.xlu0
      %v2101 = vpop.trf.xlu0
      %v2102 = vpop.trf.xlu0
      %v2103 = vpop.trf.xlu0
      %v2104 = vpop.trf.xlu0
      %v2105 = vpop.trf.xlu0
      %v2106 = vpop.trf.xlu0
      %v2107 = vpop.trf.xlu0
      %v2108 = vpop.trf.xlu0
      %v2109 = vpop.trf.xlu0
      %v2110 = vpop.trf.xlu0
      %v2111 = vpop.trf.xlu0
      %v2112 = vpop.trf.xlu0
      %v2113 = vpop.trf.xlu0
      %v2115 = vsel %vm399, %v2098, 0
      %v2118 = vsel %vm399, %v2099, 0
      %2120 = vmatprep.subr.mxu0 0.0
      %2121 = vmatpush1.msra.mxu0 %v2044
      %2122 = vmatprep.subr.mxu0 0.0
      %2123 = vmatpush1.msra.mxu0 %v2049
      %2124 = vmatprep.subr.mxu0 0.0
      %2125 = vmatpush1.msra.mxu0 %v2054
      %2126 = vmatprep.subr.mxu0 0.0
      %2127 = vmatpush1.msra.mxu0 %v2059
      %2128 = vmatprep.subr.mxu0 0.0
      %2129 = vmatpush1.msra.mxu0 %v2064
      %2130 = vmatprep.subr.mxu0 0.0
      %2131 = vmatpush1.msra.mxu0 %v2069
      %2132 = vmatprep.subr.mxu0 0.0
      %2133 = vmatpush1.msra.mxu0 %v2074
      %2134 = vmatprep.subr.mxu0 0.0
      %2135 = vmatpush1.msra.mxu0 %v2079
      %2136 = vmatprep.subr.mxu0 0.0
      %2137 = vmatpush1.msra.mxu0 0.0
      %2138 = vmatprep.subr.mxu0 0.0
      %2139 = vmatpush1.msra.mxu0 0.0
      %2140 = vmatprep.subr.mxu0 0.0
      %2141 = vmatpush1.msra.mxu0 0.0
      %2142 = vmatprep.subr.mxu0 0.0
      %2143 = vmatpush1.msra.mxu0 0.0
      %2144 = vmatprep.subr.mxu0 0.0
      %2145 = vmatpush1.msra.mxu0 0.0
      %2146 = vmatprep.subr.mxu0 0.0
      %2147 = vmatpush1.msra.mxu0 0.0
      %2148 = vmatprep.subr.mxu0 0.0
      %2149 = vmatpush1.msra.mxu0 0.0
      %2150 = vmatprep.subr.mxu0 0.0
      %2151 = vmatpush1.msra.mxu0 0.0
      %2152 = vmatprep.subr.mxu0 0.0
      %2153 = vmatpush1.msra.mxu0 0.0
      %2154 = vmatprep.subr.mxu0 0.0
      %2155 = vmatpush1.msra.mxu0 0.0
      %2156 = vmatprep.subr.mxu0 0.0
      %2157 = vmatpush1.msra.mxu0 0.0
      %2158 = vmatprep.subr.mxu0 0.0
      %2159 = vmatpush1.msra.mxu0 0.0
      %2160 = vmatprep.subr.mxu0 0.0
      %2161 = vmatpush1.msra.mxu0 0.0
      %2162 = vmatprep.subr.mxu0 0.0
      %2163 = vmatpush1.msra.mxu0 0.0
      %2164 = vmatprep.subr.mxu0 0.0
      %2165 = vmatpush1.msra.mxu0 0.0
      %2166 = vmatprep.subr.mxu0 0.0
      %2167 = vmatpush1.msra.mxu0 0.0
      %2168 = vmatprep.subr.mxu0 0.0
      %2169 = vmatpush1.msra.mxu0 0.0
      %2170 = vmatprep.subr.mxu0 0.0
      %2171 = vmatpush1.msra.mxu0 0.0
      %2172 = vmatprep.subr.mxu0 0.0
      %2173 = vmatpush1.msra.mxu0 0.0
      %2174 = vmatprep.subr.mxu0 0.0
      %2175 = vmatpush1.msra.mxu0 0.0
      %2176 = vmatprep.subr.mxu0 0.0
      %2177 = vmatpush1.msra.mxu0 0.0
      %2178 = vmatprep.subr.mxu0 0.0
      %2179 = vmatpush1.msra.mxu0 0.0
      %2180 = vmatprep.subr.mxu0 0.0
      %2181 = vmatpush1.msra.mxu0 0.0
      %2182 = vmatprep.subr.mxu0 0.0
      %2183 = vmatpush1.msra.mxu0 0.0
      %2184 = vmatprep.mubr.f32.mxu0 0.0
      %2185 = vmatmul.mubr.f32.gmra.mrb[0].mxu0 %v2115
      %v2186 = vpop.f32.mrb[0].mxu0
      %v2187 = vadd.f32 0.0, %v2186
      %v2188 = vpop.f32.mrb[0].mxu0
      %2189 = vmatprep.mubr.f32.mxu0 0.0
      %2190 = vmatmul.mubr.f32.gmra.mrb[0].mxu0 %v2118
      %v2191 = vpop.f32.mrb[0].mxu0
      %v2192 = vadd.f32 0.0, %v2191
      %v2193 = vpop.f32.mrb[0].mxu0
      %2194 = vdwg.mxu0
      %v2195 = vsel %vm1156, %v2187, -inf
      %v2196 = vsel %vm1156, %v2192, -inf
      %v2197 = vmax.f32 %v2195, %v2196
      %v2198 = vrot.slane %v2197, 4
      %v2199 = vmax.f32 %v2197, %v2198
      %v2200 = vrot.slane %v2199, 2
      %v2201 = vmax.f32 %v2199, %v2200
      %v2202 = vrot.slane %v2201, 1
      %v2203 = vmax.f32 %v2201, %v2202
      %v2204 = vsub.f32 %v2187, %v2203
      %v2205 = vsub.f32 %v2192, %v2203
      %v2206 = vmul.f32 %v2204, 1.442695
      %v2207 = vpow.pop %v2206
      %v2208 = vmul.f32 %v2205, 1.442695
      %v2209 = vpow.pop %v2208
      %v2210 = vsel %vm1156, %v2207, 0.0
      %v2211 = vsel %vm1156, %v2209, 0.0
      %v2212 = vadd.f32 %v2210, %v2211
      %v2213 = vrot.slane %v2212, 4
      %v2214 = vadd.f32 %v2212, %v2213
      %v2215 = vrot.slane %v2214, 2
      %v2216 = vadd.f32 %v2214, %v2215
      %v2217 = vrot.slane %v2216, 1
      %v2218 = vadd.f32 %v2216, %v2217
      %v2219 = vrcp.pop %v2218
      %v2220 = vmul.f32 %v2207, %v2219
      %v2221 = vmul.f32 %v2209, %v2219
      %v2223 = vsel %vm1156, %v2044, 0
      %v2226 = vsel %vm1156, %v2049, 0
      %v2229 = vsel %vm1156, %v2054, 0
      %v2232 = vsel %vm1156, %v2059, 0
      %v2235 = vsel %vm1156, %v2064, 0
      %v2238 = vsel %vm1156, %v2069, 0
      %v2241 = vsel %vm1156, %v2074, 0
      %v2244 = vsel %vm1156, %v2079, 0
      %2246 = vmatprep.subr.mxu0 0.0
      %2247 = vmatpush1.msra.mxu0 %v2220
      %2248 = vmatprep.subr.mxu0 0.0
      %2249 = vmatpush1.msra.mxu0 %v2221
      %2250 = vmatprep.subr.mxu0 0.0
      %2251 = vmatpush1.msra.mxu0 0.0
      %2252 = vmatprep.subr.mxu0 0.0
      %2253 = vmatpush1.msra.mxu0 0.0
      %2254 = vmatprep.subr.mxu0 0.0
      %2255 = vmatpush1.msra.mxu0 0.0
      %2256 = vmatprep.subr.mxu0 0.0
      %2257 = vmatpush1.msra.mxu0 0.0
      %2258 = vmatprep.subr.mxu0 0.0
      %2259 = vmatpush1.msra.mxu0 0.0
      %2260 = vmatprep.subr.mxu0 0.0
      %2261 = vmatpush1.msra.mxu0 0.0
      %2262 = vmatprep.subr.mxu0 0.0
      %2263 = vmatpush1.msra.mxu0 0.0
      %2264 = vmatprep.subr.mxu0 0.0
      %2265 = vmatpush1.msra.mxu0 0.0
      %2266 = vmatprep.subr.mxu0 0.0
      %2267 = vmatpush1.msra.mxu0 0.0
      %2268 = vmatprep.subr.mxu0 0.0
      %2269 = vmatpush1.msra.mxu0 0.0
      %2270 = vmatprep.subr.mxu0 0.0
      %2271 = vmatpush1.msra.mxu0 0.0
      %2272 = vmatprep.subr.mxu0 0.0
      %2273 = vmatpush1.msra.mxu0 0.0
      %2274 = vmatprep.subr.mxu0 0.0
      %2275 = vmatpush1.msra.mxu0 0.0
      %2276 = vmatprep.subr.mxu0 0.0
      %2277 = vmatpush1.msra.mxu0 0.0
      %2278 = vmatprep.subr.mxu0 0.0
      %2279 = vmatpush1.msra.mxu0 0.0
      %2280 = vmatprep.subr.mxu0 0.0
      %2281 = vmatpush1.msra.mxu0 0.0
      %2282 = vmatprep.subr.mxu0 0.0
      %2283 = vmatpush1.msra.mxu0 0.0
      %2284 = vmatprep.subr.mxu0 0.0
      %2285 = vmatpush1.msra.mxu0 0.0
      %2286 = vmatprep.subr.mxu0 0.0
      %2287 = vmatpush1.msra.mxu0 0.0
      %2288 = vmatprep.subr.mxu0 0.0
      %2289 = vmatpush1.msra.mxu0 0.0
      %2290 = vmatprep.subr.mxu0 0.0
      %2291 = vmatpush1.msra.mxu0 0.0
      %2292 = vmatprep.subr.mxu0 0.0
      %2293 = vmatpush1.msra.mxu0 0.0
      %2294 = vmatprep.subr.mxu0 0.0
      %2295 = vmatpush1.msra.mxu0 0.0
      %2296 = vmatprep.subr.mxu0 0.0
      %2297 = vmatpush1.msra.mxu0 0.0
      %2298 = vmatprep.subr.mxu0 0.0
      %2299 = vmatpush1.msra.mxu0 0.0
      %2300 = vmatprep.subr.mxu0 0.0
      %2301 = vmatpush1.msra.mxu0 0.0
      %2302 = vmatprep.subr.mxu0 0.0
      %2303 = vmatpush1.msra.mxu0 0.0
      %2304 = vmatprep.subr.mxu0 0.0
      %2305 = vmatpush1.msra.mxu0 0.0
      %2306 = vmatprep.subr.mxu0 0.0
      %2307 = vmatpush1.msra.mxu0 0.0
      %2308 = vmatprep.subr.mxu0 0.0
      %2309 = vmatpush1.msra.mxu0 0.0
      %2310 = vmatprep.mubr.f32.mxu0 0.0
      %2311 = vmatmul.mubr.f32.gmra.mrb[0].mxu0 %v2223
      %v2312 = vpop.f32.mrb[0].mxu0
      %v2313 = vadd.f32 0.0, %v2312
      %v2314 = vpop.f32.mrb[0].mxu0
      %2315 = vmatprep.mubr.f32.mxu0 0.0
      %2316 = vmatmul.mubr.f32.gmra.mrb[0].mxu0 %v2226
      %v2317 = vpop.f32.mrb[0].mxu0
      %v2318 = vadd.f32 0.0, %v2317
      %v2319 = vpop.f32.mrb[0].mxu0
      %2320 = vmatprep.mubr.f32.mxu0 0.0
      %2321 = vmatmul.mubr.f32.gmra.mrb[0].mxu0 %v2229
      %v2322 = vpop.f32.mrb[0].mxu0
      %v2323 = vadd.f32 0.0, %v2322
      %v2324 = vpop.f32.mrb[0].mxu0
      %2325 = vmatprep.mubr.f32.mxu0 0.0
      %2326 = vmatmul.mubr.f32.gmra.mrb[0].mxu0 %v2232
      %v2327 = vpop.f32.mrb[0].mxu0
      %v2328 = vadd.f32 0.0, %v2327
      %v2329 = vpop.f32.mrb[0].mxu0
      %2330 = vmatprep.mubr.f32.mxu0 0.0
      %2331 = vmatmul.mubr.f32.gmra.mrb[0].mxu0 %v2235
      %v2332 = vpop.f32.mrb[0].mxu0
      %v2333 = vadd.f32 0.0, %v2332
      %v2334 = vpop.f32.mrb[0].mxu0
      %2335 = vmatprep.mubr.f32.mxu0 0.0
      %2336 = vmatmul.mubr.f32.gmra.mrb[0].mxu0 %v2238
      %v2337 = vpop.f32.mrb[0].mxu0
      %v2338 = vadd.f32 0.0, %v2337
      %v2339 = vpop.f32.mrb[0].mxu0
      %2340 = vmatprep.mubr.f32.mxu0 0.0
      %2341 = vmatmul.mubr.f32.gmra.mrb[0].mxu0 %v2241
      %v2342 = vpop.f32.mrb[0].mxu0
      %v2343 = vadd.f32 0.0, %v2342
      %v2344 = vpop.f32.mrb[0].mxu0
      %2345 = vmatprep.mubr.f32.mxu0 0.0
      %2346 = vmatmul.mubr.f32.gmra.mrb[0].mxu0 %v2244
      %v2347 = vpop.f32.mrb[0].mxu0
      %v2348 = vadd.f32 0.0, %v2347
      %v2349 = vpop.f32.mrb[0].mxu0
      %2350 = vdwg.mxu0
      %v2351 = vadd.f32 %v1313, %v2313
      %v2352 = vadd.f32 %v1314, %v2318
      %v2353 = vadd.f32 %v1315, %v2323
      %v2354 = vadd.f32 %v1316, %v2328
      %v2355 = vadd.f32 %v1317, %v2333
      %v2356 = vadd.f32 %v1318, %v2338
      %v2357 = vadd.f32 %v1319, %v2343
      %v2358 = vadd.f32 %v1320, %v2348
      %2359 = vst.msk [vmem:[%s278] sm:$0xff] %vm1156, %v2351
      %2360 = vst.msk [vmem:[%s278 + $0x8] sm:$0xff] %vm1156, %v2352
      %2361 = vst.msk [vmem:[%s278 + $0x10] sm:$0xff] %vm1156, %v2353
      %2362 = vst.msk [vmem:[%s278 + $0x18] sm:$0xff] %vm1156, %v2354
      %2363 = vst.msk [vmem:[%s278 + $0x20] sm:$0xff] %vm1156, %v2355
      %2364 = vst.msk [vmem:[%s278 + $0x28] sm:$0xff] %vm1156, %v2356
      %2365 = vst.msk [vmem:[%s278 + $0x30] sm:$0xff] %vm1156, %v2357
      %2366 = vst.msk [vmem:[%s278 + $0x38] sm:$0xff] %vm1156, %v2358
      %p2367 = scmp.lt.s32.totalorder %s18, 1
      %s2368 = scalar_select %p2367, %s18, 1
      %s2369 = smul.addr %s2368, 8
      %s2370 = smul.addr %s2369, 8
      %s2371 = scalar_lea.vmem %s7, %s2370
      // Predicated region
      $region49: #{tpu_custom_call.1} parent=47 // pred_check
        %p2372 = pneg %p188
      $region50: #{tpu_custom_call.1} parent=47 // pred_check_branch
        %2374 = sbr.rel (%p2372) target = $region52
      $region51: #{tpu_custom_call.1} parent=47 // pred_region
        _
      $region52: #{tpu_custom_call.1} parent=47 // pred_fallthru
        _
    $region48: #{tpu_custom_call.1} parent=5 // pred_fallthru
      _
    %p2375 = scmp.le.s32.totalorder 2, %s13
    // Predicated region
    $region53: #{tpu_custom_call.1} parent=5 // pred_check
      %p2376 = pneg %p2375
    $region54: #{tpu_custom_call.1} parent=5 // pred_check_branch
      %2378 = sbr.rel (%p2376) target = $region56
    $region55: #{tpu_custom_call.1} parent=5 // pred_region
      %s2379 = ssub.s32 %s13, 2
      // Predicated region
      $region57: #{tpu_custom_call.1} parent=55 // pred_check
        %p2380 = pneg %p194
      $region58: #{tpu_custom_call.1} parent=55 // pred_check_branch
        %2382 = sbr.rel (%p2380) target = $region60
      $region59: #{tpu_custom_call.1} parent=55 // pred_region
        %p2383 = scmp.lt.s32.totalorder %s19, 1
        %s2384 = scalar_select %p2383, %s19, 1
        %s2385 = smul.addr %s2384, 8
        %s2386 = smul.addr %s2385, 8
        %s2387 = scalar_lea.vmem %s7, %s2386
      $region60: #{tpu_custom_call.1} parent=55 // pred_fallthru
        _
    $region56: #{tpu_custom_call.1} parent=5 // pred_fallthru
      _
  $region6: #{tpu_custom_call.1} parent=0 // loop_footer
    %s17 = sadd.s32 1, %s13
  $region7: #{tpu_custom_call.1} parent=0 // loop_footer_branch
    %12 = sbr.rel target = $region3
  $region8: #{tpu_custom_call.1} parent=0 // loop_exit
    _

</llo_original>
